<compile_context>
chip_gen: v5e
topology: v5e:2x2
jax: 0.10.0
libtpu: 0.0.40
codegen_flags: <defaults>
</compile_context>

<pallas_src>
import jax
import jax.numpy as jnp
from jax.experimental import pallas as pl
from jax.experimental.pallas import tpu as pltpu  # noqa: F401  (TPU backend)

EPS = 1e-3  # matches BatchNorm2d(384, eps=0.001) in the module


def _bn_kernel(x_ref, w_ref, b_ref, o_ref):
    # x_ref: (N, C, M) with M = H*W; w_ref/b_ref: (1, C, 1)
    x = x_ref[...]  # already f32; no redundant astype

    # Per-channel batch statistics (biased variance), two-pass for stability.
    # Block shape == full array shape, so the lane padding (49 -> 128) is
    # masked by Mosaic and jnp.mean is safe here.
    mean = jnp.mean(x, axis=(0, 2), keepdims=True)            # (1, C, 1)
    centered = x - mean
    var = jnp.mean(centered * centered, axis=(0, 2), keepdims=True)

    inv = jax.lax.rsqrt(var + EPS)                             # (1, C, 1)
    scale = inv * w_ref[...]                                   # (1, C, 1)
    shift = b_ref[...] - mean * scale                          # (1, C, 1)

    o_ref[...] = (x * scale + shift).astype(o_ref.dtype)


def batchnorm2d(x_nchw, weight, bias):
    """BatchNorm2d forward (training-mode batch stats) via a Pallas TPU kernel.

    x_nchw : (N, C, H, W) float32
    weight : (C,) float32
    bias   : (C,) float32
    """
    N, C, H, W = x_nchw.shape
    HW = H * W

    # NCHW -> (N, C, H*W): a zero-cost contiguous reshape (no transpose).
    x3d = x_nchw.reshape(N, C, HW)
    w3d = weight.reshape(1, C, 1).astype(jnp.float32)
    b3d = bias.reshape(1, C, 1).astype(jnp.float32)

    y3d = pl.pallas_call(
        _bn_kernel,
        out_shape=jax.ShapeDtypeStruct((N, C, HW), x_nchw.dtype),
        in_specs=[
            pl.BlockSpec((N, C, HW), lambda: (0, 0, 0)),
            pl.BlockSpec((1, C, 1), lambda: (0, 0, 0)),
            pl.BlockSpec((1, C, 1), lambda: (0, 0, 0)),
        ],
        out_specs=pl.BlockSpec((N, C, HW), lambda: (0, 0, 0)),
        # Advisory cost hint so XLA can overlap this tiny custom call.
        cost_estimate=pl.CostEstimate(
            flops=5 * N * C * HW,
            transcendentals=C,
            bytes_accessed=2 * N * C * HW * 4 + 2 * C * 4,
        ),
    )(x3d, w3d, b3d)

    # (N, C, H*W) -> NCHW: zero-cost reshape back.
    return y3d.reshape(N, C, H, W)

# TODO(synk): running_mean/running_var buffer updates (momentum=0.1) are a
# training-time side effect of the module and do not affect the forward output;
# they are not modeled here.


if __name__ == "__main__":
    key = jax.random.PRNGKey(0)
    kx, kw, kb = jax.random.split(key, 3)

    # Shapes implied by the module: x924 ~ [1, 384, 7, 7], BatchNorm2d(384)
    N, C, H, W = 1, 384, 7, 7
    x = jax.random.normal(kx, (N, C, H, W), dtype=jnp.float32)
    # Deterministic (non-trivial) affine parameters of shape (C,)
    weight = 1.0 + 0.1 * jax.random.normal(kw, (C,), dtype=jnp.float32)
    bias = 0.1 * jax.random.normal(kb, (C,), dtype=jnp.float32)

    y = batchnorm2d(x, weight, bias)
    jax.block_until_ready(y)

    # Lightweight sanity check against a pure-JAX reference of the same math.
    mean = jnp.mean(x, axis=(0, 2, 3), keepdims=True)
    var = jnp.mean((x - mean) ** 2, axis=(0, 2, 3), keepdims=True)
    ref = (x - mean) * jax.lax.rsqrt(var + EPS) * weight.reshape(1, C, 1, 1) \
          + bias.reshape(1, C, 1, 1)
    assert jnp.allclose(y, ref, atol=1e-4, rtol=1e-4)

    print("KERNEL_OK")
</pallas_src>

<mosaic_0001>
module attributes {stable_mosaic.version = 11 : i64} {
  func.func @_bn_kernel(%arg0: memref<1x384x49xf32, #tpu.memory_space<vmem>>, %arg1: memref<1x384x1xf32, #tpu.memory_space<vmem>>, %arg2: memref<1x384x1xf32, #tpu.memory_space<vmem>>, %arg3: memref<1x384x49xf32, #tpu.memory_space<vmem>>) attributes {dimension_semantics = [], scalar_prefetch = 0 : i64, scratch_operands = 0 : i64, tpu.core_type = #tpu.core_type<tc>} {
    %c0 = arith.constant 0 : index
    %c0_0 = arith.constant 0 : index
    %c0_1 = arith.constant 0 : index
    %0 = vector.load %arg0[%c0, %c0_0, %c0_1] : memref<1x384x49xf32, #tpu.memory_space<vmem>>, vector<1x384x49xf32>
    %cst = arith.constant dense<0.000000e+00> : vector<384xf32>
    %1 = vector.multi_reduction <add>, %0, %cst [0, 2] : vector<1x384x49xf32> to vector<384xf32>
    %2 = vector.shape_cast %1 : vector<384xf32> to vector<1x384x1xf32>
    %cst_2 = arith.constant 4.900000e+01 : f32
    %3 = vector.broadcast %cst_2 : f32 to vector<1x384x1xf32>
    %4 = arith.divf %2, %3 : vector<1x384x1xf32>
    %5 = vector.broadcast %4 : vector<1x384x1xf32> to vector<1x384x49xf32>
    %6 = arith.subf %0, %5 : vector<1x384x49xf32>
    %7 = arith.mulf %6, %6 : vector<1x384x49xf32>
    %cst_3 = arith.constant dense<0.000000e+00> : vector<384xf32>
    %8 = vector.multi_reduction <add>, %7, %cst_3 [0, 2] : vector<1x384x49xf32> to vector<384xf32>
    %9 = vector.shape_cast %8 : vector<384xf32> to vector<1x384x1xf32>
    %cst_4 = arith.constant 4.900000e+01 : f32
    %10 = vector.broadcast %cst_4 : f32 to vector<1x384x1xf32>
    %11 = arith.divf %9, %10 : vector<1x384x1xf32>
    %cst_5 = arith.constant 1.000000e-03 : f32
    %12 = vector.broadcast %cst_5 : f32 to vector<1x384x1xf32>
    %13 = arith.addf %11, %12 : vector<1x384x1xf32>
    %14 = math.rsqrt %13 : vector<1x384x1xf32>
    %c0_6 = arith.constant 0 : index
    %c0_7 = arith.constant 0 : index
    %c0_8 = arith.constant 0 : index
    %15 = vector.load %arg1[%c0_6, %c0_7, %c0_8] : memref<1x384x1xf32, #tpu.memory_space<vmem>>, vector<1x384x1xf32>
    %16 = arith.mulf %14, %15 : vector<1x384x1xf32>
    %c0_9 = arith.constant 0 : index
    %c0_10 = arith.constant 0 : index
    %c0_11 = arith.constant 0 : index
    %17 = vector.load %arg2[%c0_9, %c0_10, %c0_11] : memref<1x384x1xf32, #tpu.memory_space<vmem>>, vector<1x384x1xf32>
    %18 = arith.mulf %4, %16 : vector<1x384x1xf32>
    %19 = arith.subf %17, %18 : vector<1x384x1xf32>
    %20 = vector.broadcast %16 : vector<1x384x1xf32> to vector<1x384x49xf32>
    %21 = arith.mulf %0, %20 : vector<1x384x49xf32>
    %22 = vector.broadcast %19 : vector<1x384x1xf32> to vector<1x384x49xf32>
    %23 = arith.addf %21, %22 : vector<1x384x49xf32>
    %c0_12 = arith.constant 0 : index
    %c0_13 = arith.constant 0 : index
    %c0_14 = arith.constant 0 : index
    %24 = vector.load %arg3[%c0_12, %c0_13, %c0_14] : memref<1x384x49xf32, #tpu.memory_space<vmem>>, vector<1x384x49xf32>
    tpu.vector_store %arg3[%c0_12, %c0_13, %c0_14], %23 {strides = array<i32>} : memref<1x384x49xf32, #tpu.memory_space<vmem>>, vector<1x384x49xf32>,
    return
  }
}

</mosaic_0001>

<llo_original>
// kernel: tpu_custom_call.1
$region0: #{tpu_custom_call.1}
  #allocation0 [shape = 'u32[]', space=smem, size = 0x4, offset = 0x4, fixed_abs, tag = 'smem constant byte address 0x4 - core index']
  #allocation1 [shape = 'u32[72,128]{1,0:T(1,128)}', space=vmem, size = 0x9000, scoped, tag = 'internal scratch']
  %s0 = inlined_call_operand.vmem [shape: f32[1,384,49], index: 0, kind: input, shape index: {}]
  %s1 = inlined_call_operand.vmem [shape: f32[1,384,1], index: 1, kind: input, shape index: {}]
  %s2 = inlined_call_operand.vmem [shape: f32[1,384,1], index: 2, kind: input, shape index: {}]
  %s3 = inlined_call_operand.vmem [shape: f32[1,384,49], index: 3, kind: output, shape index: {}]
  %s4 = sld [smem:[#allocation0]]
  $region22: #{tpu_custom_call.1} parent=0
    _
  %s6 = ssub.s32 1, %s4
  %s7 = scalar_select 0, %s6, %s4
  // Predicated region
  $region2: #{tpu_custom_call.1} parent=0 // pred_check
    _
  $region3: #{tpu_custom_call.1} parent=0 // pred_check_branch
    %9 = sbr.rel (0) target = $region5
  $region4: #{tpu_custom_call.1} parent=0 // pred_region
    _
  $region5: #{tpu_custom_call.1} parent=0 // pred_fallthru
    _
  // Predicated region
  $region6: #{tpu_custom_call.1} parent=0 // pred_check
    _
  $region7: #{tpu_custom_call.1} parent=0 // pred_check_branch
    %11 = sbr.rel (0) target = $region9
  $region8: #{tpu_custom_call.1} parent=0 // pred_region
    _
  $region9: #{tpu_custom_call.1} parent=0 // pred_fallthru
    _
  // Predicated region
  $region10: #{tpu_custom_call.1} parent=0 // pred_check
    _
  $region11: #{tpu_custom_call.1} parent=0 // pred_check_branch
    %13 = sbr.rel (0) target = $region13
  $region12: #{tpu_custom_call.1} parent=0 // pred_region
    _
  $region13: #{tpu_custom_call.1} parent=0 // pred_fallthru
    _
  %v14 = vld [vmem:[%s0] sm:$0xff]
  %v15 = vld [vmem:[%s0 + $0x8] sm:$0xff]
  %v16 = vld [vmem:[%s0 + $0x10] sm:$0xff]
  %v17 = vld [vmem:[%s0 + $0x18] sm:$0xff]
  %v18 = vld [vmem:[%s0 + $0x20] sm:$0xff]
  %v19 = vld [vmem:[%s0 + $0x28] sm:$0xff]
  %v20 = vld [vmem:[%s0 + $0x30] sm:$0xff]
  %v21 = vld [vmem:[%s0 + $0x38] sm:$0xff]
  %v22 = vld [vmem:[%s0 + $0x40] sm:$0xff]
  %v23 = vld [vmem:[%s0 + $0x48] sm:$0xff]
  %v24 = vld [vmem:[%s0 + $0x50] sm:$0xff]
  %v25 = vld [vmem:[%s0 + $0x58] sm:$0xff]
  %v26 = vld [vmem:[%s0 + $0x60] sm:$0xff]
  %v27 = vld [vmem:[%s0 + $0x68] sm:$0xff]
  %v28 = vld [vmem:[%s0 + $0x70] sm:$0xff]
  %v29 = vld [vmem:[%s0 + $0x78] sm:$0xff]
  %v30 = vld [vmem:[%s0 + $0x80] sm:$0xff]
  %v31 = vld [vmem:[%s0 + $0x88] sm:$0xff]
  %v32 = vld [vmem:[%s0 + $0x90] sm:$0xff]
  %v33 = vld [vmem:[%s0 + $0x98] sm:$0xff]
  %v34 = vld [vmem:[%s0 + $0xa0] sm:$0xff]
  %v35 = vld [vmem:[%s0 + $0xa8] sm:$0xff]
  %v36 = vld [vmem:[%s0 + $0xb0] sm:$0xff]
  %v37 = vld [vmem:[%s0 + $0xb8] sm:$0xff]
  %v38 = vld [vmem:[%s0 + $0xc0] sm:$0xff]
  %v39 = vld [vmem:[%s0 + $0xc8] sm:$0xff]
  %v40 = vld [vmem:[%s0 + $0xd0] sm:$0xff]
  %v41 = vld [vmem:[%s0 + $0xd8] sm:$0xff]
  %v42 = vld [vmem:[%s0 + $0xe0] sm:$0xff]
  %v43 = vld [vmem:[%s0 + $0xe8] sm:$0xff]
  %v44 = vld [vmem:[%s0 + $0xf0] sm:$0xff]
  %v45 = vld [vmem:[%s0 + $0xf8] sm:$0xff]
  %v46 = vld [vmem:[%s0 + $0x100] sm:$0xff]
  %v47 = vld [vmem:[%s0 + $0x108] sm:$0xff]
  %v48 = vld [vmem:[%s0 + $0x110] sm:$0xff]
  %v49 = vld [vmem:[%s0 + $0x118] sm:$0xff]
  %v50 = vld [vmem:[%s0 + $0x120] sm:$0xff]
  %v51 = vld [vmem:[%s0 + $0x128] sm:$0xff]
  %v52 = vld [vmem:[%s0 + $0x130] sm:$0xff]
  %v53 = vld [vmem:[%s0 + $0x138] sm:$0xff]
  %v54 = vld [vmem:[%s0 + $0x140] sm:$0xff]
  %v55 = vld [vmem:[%s0 + $0x148] sm:$0xff]
  %v56 = vld [vmem:[%s0 + $0x150] sm:$0xff]
  %v57 = vld [vmem:[%s0 + $0x158] sm:$0xff]
  %v58 = vld [vmem:[%s0 + $0x160] sm:$0xff]
  %v59 = vld [vmem:[%s0 + $0x168] sm:$0xff]
  %v60 = vld [vmem:[%s0 + $0x170] sm:$0xff]
  %v61 = vld [vmem:[%s0 + $0x178] sm:$0xff]
  %vm62 = vcmask 400384
  %v63 = vsel %vm62, %v14, 0.0
  %64 = vadd.xlane.f32.xlu0 %v63
  %v65 = vpop.xlane.xlu0 %64
  %v66 = vsel %vm62, %v15, 0.0
  %67 = vadd.xlane.f32.xlu0 %v66
  %v68 = vpop.xlane.xlu0 %67
  %v69 = vsel %vm62, %v16, 0.0
  %70 = vadd.xlane.f32.xlu0 %v69
  %v71 = vpop.xlane.xlu0 %70
  %v72 = vsel %vm62, %v17, 0.0
  %73 = vadd.xlane.f32.xlu0 %v72
  %v74 = vpop.xlane.xlu0 %73
  %v75 = vsel %vm62, %v18, 0.0
  %76 = vadd.xlane.f32.xlu0 %v75
  %v77 = vpop.xlane.xlu0 %76
  %v78 = vsel %vm62, %v19, 0.0
  %79 = vadd.xlane.f32.xlu0 %v78
  %v80 = vpop.xlane.xlu0 %79
  %v81 = vsel %vm62, %v20, 0.0
  %82 = vadd.xlane.f32.xlu0 %v81
  %v83 = vpop.xlane.xlu0 %82
  %v84 = vsel %vm62, %v21, 0.0
  %85 = vadd.xlane.f32.xlu0 %v84
  %v86 = vpop.xlane.xlu0 %85
  %v87 = vsel %vm62, %v22, 0.0
  %88 = vadd.xlane.f32.xlu0 %v87
  %v89 = vpop.xlane.xlu0 %88
  %v90 = vsel %vm62, %v23, 0.0
  %91 = vadd.xlane.f32.xlu0 %v90
  %v92 = vpop.xlane.xlu0 %91
  %v93 = vsel %vm62, %v24, 0.0
  %94 = vadd.xlane.f32.xlu0 %v93
  %v95 = vpop.xlane.xlu0 %94
  %v96 = vsel %vm62, %v25, 0.0
  %97 = vadd.xlane.f32.xlu0 %v96
  %v98 = vpop.xlane.xlu0 %97
  %v99 = vsel %vm62, %v26, 0.0
  %100 = vadd.xlane.f32.xlu0 %v99
  %v101 = vpop.xlane.xlu0 %100
  %v102 = vsel %vm62, %v27, 0.0
  %103 = vadd.xlane.f32.xlu0 %v102
  %v104 = vpop.xlane.xlu0 %103
  %v105 = vsel %vm62, %v28, 0.0
  %106 = vadd.xlane.f32.xlu0 %v105
  %v107 = vpop.xlane.xlu0 %106
  %v108 = vsel %vm62, %v29, 0.0
  %109 = vadd.xlane.f32.xlu0 %v108
  %v110 = vpop.xlane.xlu0 %109
  %v111 = vsel %vm62, %v30, 0.0
  %112 = vadd.xlane.f32.xlu0 %v111
  %v113 = vpop.xlane.xlu0 %112
  %v114 = vsel %vm62, %v31, 0.0
  %115 = vadd.xlane.f32.xlu0 %v114
  %v116 = vpop.xlane.xlu0 %115
  %v117 = vsel %vm62, %v32, 0.0
  %118 = vadd.xlane.f32.xlu0 %v117
  %v119 = vpop.xlane.xlu0 %118
  %v120 = vsel %vm62, %v33, 0.0
  %121 = vadd.xlane.f32.xlu0 %v120
  %v122 = vpop.xlane.xlu0 %121
  %v123 = vsel %vm62, %v34, 0.0
  %124 = vadd.xlane.f32.xlu0 %v123
  %v125 = vpop.xlane.xlu0 %124
  %v126 = vsel %vm62, %v35, 0.0
  %127 = vadd.xlane.f32.xlu0 %v126
  %v128 = vpop.xlane.xlu0 %127
  %v129 = vsel %vm62, %v36, 0.0
  %130 = vadd.xlane.f32.xlu0 %v129
  %v131 = vpop.xlane.xlu0 %130
  %v132 = vsel %vm62, %v37, 0.0
  %133 = vadd.xlane.f32.xlu0 %v132
  %v134 = vpop.xlane.xlu0 %133
  %v135 = vsel %vm62, %v38, 0.0
  %136 = vadd.xlane.f32.xlu0 %v135
  %v137 = vpop.xlane.xlu0 %136
  %v138 = vsel %vm62, %v39, 0.0
  %139 = vadd.xlane.f32.xlu0 %v138
  %v140 = vpop.xlane.xlu0 %139
  %v141 = vsel %vm62, %v40, 0.0
  %142 = vadd.xlane.f32.xlu0 %v141
  %v143 = vpop.xlane.xlu0 %142
  %v144 = vsel %vm62, %v41, 0.0
  %145 = vadd.xlane.f32.xlu0 %v144
  %v146 = vpop.xlane.xlu0 %145
  %v147 = vsel %vm62, %v42, 0.0
  %148 = vadd.xlane.f32.xlu0 %v147
  %v149 = vpop.xlane.xlu0 %148
  %v150 = vsel %vm62, %v43, 0.0
  %151 = vadd.xlane.f32.xlu0 %v150
  %v152 = vpop.xlane.xlu0 %151
  %v153 = vsel %vm62, %v44, 0.0
  %154 = vadd.xlane.f32.xlu0 %v153
  %v155 = vpop.xlane.xlu0 %154
  %v156 = vsel %vm62, %v45, 0.0
  %157 = vadd.xlane.f32.xlu0 %v156
  %v158 = vpop.xlane.xlu0 %157
  %v159 = vsel %vm62, %v46, 0.0
  %160 = vadd.xlane.f32.xlu0 %v159
  %v161 = vpop.xlane.xlu0 %160
  %v162 = vsel %vm62, %v47, 0.0
  %163 = vadd.xlane.f32.xlu0 %v162
  %v164 = vpop.xlane.xlu0 %163
  %v165 = vsel %vm62, %v48, 0.0
  %166 = vadd.xlane.f32.xlu0 %v165
  %v167 = vpop.xlane.xlu0 %166
  %v168 = vsel %vm62, %v49, 0.0
  %169 = vadd.xlane.f32.xlu0 %v168
  %v170 = vpop.xlane.xlu0 %169
  %v171 = vsel %vm62, %v50, 0.0
  %172 = vadd.xlane.f32.xlu0 %v171
  %v173 = vpop.xlane.xlu0 %172
  %v174 = vsel %vm62, %v51, 0.0
  %175 = vadd.xlane.f32.xlu0 %v174
  %v176 = vpop.xlane.xlu0 %175
  %v177 = vsel %vm62, %v52, 0.0
  %178 = vadd.xlane.f32.xlu0 %v177
  %v179 = vpop.xlane.xlu0 %178
  %v180 = vsel %vm62, %v53, 0.0
  %181 = vadd.xlane.f32.xlu0 %v180
  %v182 = vpop.xlane.xlu0 %181
  %v183 = vsel %vm62, %v54, 0.0
  %184 = vadd.xlane.f32.xlu0 %v183
  %v185 = vpop.xlane.xlu0 %184
  %v186 = vsel %vm62, %v55, 0.0
  %187 = vadd.xlane.f32.xlu0 %v186
  %v188 = vpop.xlane.xlu0 %187
  %v189 = vsel %vm62, %v56, 0.0
  %190 = vadd.xlane.f32.xlu0 %v189
  %v191 = vpop.xlane.xlu0 %190
  %v192 = vsel %vm62, %v57, 0.0
  %193 = vadd.xlane.f32.xlu0 %v192
  %v194 = vpop.xlane.xlu0 %193
  %v195 = vsel %vm62, %v58, 0.0
  %196 = vadd.xlane.f32.xlu0 %v195
  %v197 = vpop.xlane.xlu0 %196
  %v198 = vsel %vm62, %v59, 0.0
  %199 = vadd.xlane.f32.xlu0 %v198
  %v200 = vpop.xlane.xlu0 %199
  %v201 = vsel %vm62, %v60, 0.0
  %202 = vadd.xlane.f32.xlu0 %v201
  %v203 = vpop.xlane.xlu0 %202
  %v204 = vsel %vm62, %v61, 0.0
  %205 = vadd.xlane.f32.xlu0 %v204
  %v206 = vpop.xlane.xlu0 %205
  %v207 = vrcp.pop 49.0
  %v208 = vmul.f32 49.0, %v207
  %v209 = vsub.f32 1.0, %v208
  %v210 = vmul.f32 %v207, %v209
  %v211 = vadd.f32 %v207, %v210
  %vm212 = vweird.f32 %v207
  %v213 = vsel %vm212, %v207, %v211
  %v214 = vmul.f32 %v65, %v213
  %v215 = vmul.f32 %v68, %v213
  %v216 = vmul.f32 %v71, %v213
  %v217 = vmul.f32 %v74, %v213
  %v218 = vmul.f32 %v77, %v213
  %v219 = vmul.f32 %v80, %v213
  %v220 = vmul.f32 %v83, %v213
  %v221 = vmul.f32 %v86, %v213
  %v222 = vmul.f32 %v89, %v213
  %v223 = vmul.f32 %v92, %v213
  %v224 = vmul.f32 %v95, %v213
  %v225 = vmul.f32 %v98, %v213
  %v226 = vmul.f32 %v101, %v213
  %v227 = vmul.f32 %v104, %v213
  %v228 = vmul.f32 %v107, %v213
  %v229 = vmul.f32 %v110, %v213
  %v230 = vmul.f32 %v113, %v213
  %v231 = vmul.f32 %v116, %v213
  %v232 = vmul.f32 %v119, %v213
  %v233 = vmul.f32 %v122, %v213
  %v234 = vmul.f32 %v125, %v213
  %v235 = vmul.f32 %v128, %v213
  %v236 = vmul.f32 %v131, %v213
  %v237 = vmul.f32 %v134, %v213
  %v238 = vmul.f32 %v137, %v213
  %v239 = vmul.f32 %v140, %v213
  %v240 = vmul.f32 %v143, %v213
  %v241 = vmul.f32 %v146, %v213
  %v242 = vmul.f32 %v149, %v213
  %v243 = vmul.f32 %v152, %v213
  %v244 = vmul.f32 %v155, %v213
  %v245 = vmul.f32 %v158, %v213
  %v246 = vmul.f32 %v161, %v213
  %v247 = vmul.f32 %v164, %v213
  %v248 = vmul.f32 %v167, %v213
  %v249 = vmul.f32 %v170, %v213
  %v250 = vmul.f32 %v173, %v213
  %v251 = vmul.f32 %v176, %v213
  %v252 = vmul.f32 %v179, %v213
  %v253 = vmul.f32 %v182, %v213
  %v254 = vmul.f32 %v185, %v213
  %v255 = vmul.f32 %v188, %v213
  %v256 = vmul.f32 %v191, %v213
  %v257 = vmul.f32 %v194, %v213
  %v258 = vmul.f32 %v197, %v213
  %v259 = vmul.f32 %v200, %v213
  %v260 = vmul.f32 %v203, %v213
  %v261 = vmul.f32 %v206, %v213
  %v262 = vsub.f32 %v14, %v214
  %v263 = vsub.f32 %v15, %v215
  %v264 = vsub.f32 %v16, %v216
  %v265 = vsub.f32 %v17, %v217
  %v266 = vsub.f32 %v18, %v218
  %v267 = vsub.f32 %v19, %v219
  %v268 = vsub.f32 %v20, %v220
  %v269 = vsub.f32 %v21, %v221
  %v270 = vsub.f32 %v22, %v222
  %v271 = vsub.f32 %v23, %v223
  %v272 = vsub.f32 %v24, %v224
  %v273 = vsub.f32 %v25, %v225
  %v274 = vsub.f32 %v26, %v226
  %v275 = vsub.f32 %v27, %v227
  %v276 = vsub.f32 %v28, %v228
  %v277 = vsub.f32 %v29, %v229
  %v278 = vsub.f32 %v30, %v230
  %v279 = vsub.f32 %v31, %v231
  %v280 = vsub.f32 %v32, %v232
  %v281 = vsub.f32 %v33, %v233
  %v282 = vsub.f32 %v34, %v234
  %v283 = vsub.f32 %v35, %v235
  %v284 = vsub.f32 %v36, %v236
  %v285 = vsub.f32 %v37, %v237
  %v286 = vsub.f32 %v38, %v238
  %v287 = vsub.f32 %v39, %v239
  %v288 = vsub.f32 %v40, %v240
  %v289 = vsub.f32 %v41, %v241
  %v290 = vsub.f32 %v42, %v242
  %v291 = vsub.f32 %v43, %v243
  %v292 = vsub.f32 %v44, %v244
  %v293 = vsub.f32 %v45, %v245
  %v294 = vsub.f32 %v46, %v246
  %v295 = vsub.f32 %v47, %v247
  %v296 = vsub.f32 %v48, %v248
  %v297 = vsub.f32 %v49, %v249
  %v298 = vsub.f32 %v50, %v250
  %v299 = vsub.f32 %v51, %v251
  %v300 = vsub.f32 %v52, %v252
  %v301 = vsub.f32 %v53, %v253
  %v302 = vsub.f32 %v54, %v254
  %v303 = vsub.f32 %v55, %v255
  %v304 = vsub.f32 %v56, %v256
  %v305 = vsub.f32 %v57, %v257
  %v306 = vsub.f32 %v58, %v258
  %v307 = vsub.f32 %v59, %v259
  %v308 = vsub.f32 %v60, %v260
  %v309 = vsub.f32 %v61, %v261
  %v310 = vmul.f32 %v262, %v262
  %v311 = vmul.f32 %v263, %v263
  %v312 = vmul.f32 %v264, %v264
  %v313 = vmul.f32 %v265, %v265
  %v314 = vmul.f32 %v266, %v266
  %v315 = vmul.f32 %v267, %v267
  %v316 = vmul.f32 %v268, %v268
  %v317 = vmul.f32 %v269, %v269
  %v318 = vmul.f32 %v270, %v270
  %v319 = vmul.f32 %v271, %v271
  %v320 = vmul.f32 %v272, %v272
  %v321 = vmul.f32 %v273, %v273
  %v322 = vmul.f32 %v274, %v274
  %v323 = vmul.f32 %v275, %v275
  %v324 = vmul.f32 %v276, %v276
  %v325 = vmul.f32 %v277, %v277
  %v326 = vmul.f32 %v278, %v278
  %v327 = vmul.f32 %v279, %v279
  %v328 = vmul.f32 %v280, %v280
  %v329 = vmul.f32 %v281, %v281
  %v330 = vmul.f32 %v282, %v282
  %v331 = vmul.f32 %v283, %v283
  %v332 = vmul.f32 %v284, %v284
  %v333 = vmul.f32 %v285, %v285
  %v334 = vmul.f32 %v286, %v286
  %v335 = vmul.f32 %v287, %v287
  %v336 = vmul.f32 %v288, %v288
  %v337 = vmul.f32 %v289, %v289
  %v338 = vmul.f32 %v290, %v290
  %v339 = vmul.f32 %v291, %v291
  %v340 = vmul.f32 %v292, %v292
  %v341 = vmul.f32 %v293, %v293
  %v342 = vmul.f32 %v294, %v294
  %v343 = vmul.f32 %v295, %v295
  %v344 = vmul.f32 %v296, %v296
  %v345 = vmul.f32 %v297, %v297
  %v346 = vmul.f32 %v298, %v298
  %v347 = vmul.f32 %v299, %v299
  %v348 = vmul.f32 %v300, %v300
  %v349 = vmul.f32 %v301, %v301
  %v350 = vmul.f32 %v302, %v302
  %v351 = vmul.f32 %v303, %v303
  %v352 = vmul.f32 %v304, %v304
  %v353 = vmul.f32 %v305, %v305
  %v354 = vmul.f32 %v306, %v306
  %v355 = vmul.f32 %v307, %v307
  %v356 = vmul.f32 %v308, %v308
  %v357 = vmul.f32 %v309, %v309
  %v358 = vsel %vm62, %v310, 0.0
  %359 = vadd.xlane.f32.xlu0 %v358
  %v360 = vpop.xlane.xlu0 %359
  %v361 = vsel %vm62, %v311, 0.0
  %362 = vadd.xlane.f32.xlu0 %v361
  %v363 = vpop.xlane.xlu0 %362
  %v364 = vsel %vm62, %v312, 0.0
  %365 = vadd.xlane.f32.xlu0 %v364
  %v366 = vpop.xlane.xlu0 %365
  %v367 = vsel %vm62, %v313, 0.0
  %368 = vadd.xlane.f32.xlu0 %v367
  %v369 = vpop.xlane.xlu0 %368
  %v370 = vsel %vm62, %v314, 0.0
  %371 = vadd.xlane.f32.xlu0 %v370
  %v372 = vpop.xlane.xlu0 %371
  %v373 = vsel %vm62, %v315, 0.0
  %374 = vadd.xlane.f32.xlu0 %v373
  %v375 = vpop.xlane.xlu0 %374
  %v376 = vsel %vm62, %v316, 0.0
  %377 = vadd.xlane.f32.xlu0 %v376
  %v378 = vpop.xlane.xlu0 %377
  %v379 = vsel %vm62, %v317, 0.0
  %380 = vadd.xlane.f32.xlu0 %v379
  %v381 = vpop.xlane.xlu0 %380
  %v382 = vsel %vm62, %v318, 0.0
  %383 = vadd.xlane.f32.xlu0 %v382
  %v384 = vpop.xlane.xlu0 %383
  %v385 = vsel %vm62, %v319, 0.0
  %386 = vadd.xlane.f32.xlu0 %v385
  %v387 = vpop.xlane.xlu0 %386
  %v388 = vsel %vm62, %v320, 0.0
  %389 = vadd.xlane.f32.xlu0 %v388
  %v390 = vpop.xlane.xlu0 %389
  %v391 = vsel %vm62, %v321, 0.0
  %392 = vadd.xlane.f32.xlu0 %v391
  %v393 = vpop.xlane.xlu0 %392
  %v394 = vsel %vm62, %v322, 0.0
  %395 = vadd.xlane.f32.xlu0 %v394
  %v396 = vpop.xlane.xlu0 %395
  %v397 = vsel %vm62, %v323, 0.0
  %398 = vadd.xlane.f32.xlu0 %v397
  %v399 = vpop.xlane.xlu0 %398
  %v400 = vsel %vm62, %v324, 0.0
  %401 = vadd.xlane.f32.xlu0 %v400
  %v402 = vpop.xlane.xlu0 %401
  %v403 = vsel %vm62, %v325, 0.0
  %404 = vadd.xlane.f32.xlu0 %v403
  %v405 = vpop.xlane.xlu0 %404
  %v406 = vsel %vm62, %v326, 0.0
  %407 = vadd.xlane.f32.xlu0 %v406
  %v408 = vpop.xlane.xlu0 %407
  %v409 = vsel %vm62, %v327, 0.0
  %410 = vadd.xlane.f32.xlu0 %v409
  %v411 = vpop.xlane.xlu0 %410
  %v412 = vsel %vm62, %v328, 0.0
  %413 = vadd.xlane.f32.xlu0 %v412
  %v414 = vpop.xlane.xlu0 %413
  %v415 = vsel %vm62, %v329, 0.0
  %416 = vadd.xlane.f32.xlu0 %v415
  %v417 = vpop.xlane.xlu0 %416
  %v418 = vsel %vm62, %v330, 0.0
  %419 = vadd.xlane.f32.xlu0 %v418
  %v420 = vpop.xlane.xlu0 %419
  %v421 = vsel %vm62, %v331, 0.0
  %422 = vadd.xlane.f32.xlu0 %v421
  %v423 = vpop.xlane.xlu0 %422
  %v424 = vsel %vm62, %v332, 0.0
  %425 = vadd.xlane.f32.xlu0 %v424
  %v426 = vpop.xlane.xlu0 %425
  %v427 = vsel %vm62, %v333, 0.0
  %428 = vadd.xlane.f32.xlu0 %v427
  %v429 = vpop.xlane.xlu0 %428
  %v430 = vsel %vm62, %v334, 0.0
  %431 = vadd.xlane.f32.xlu0 %v430
  %v432 = vpop.xlane.xlu0 %431
  %v433 = vsel %vm62, %v335, 0.0
  %434 = vadd.xlane.f32.xlu0 %v433
  %v435 = vpop.xlane.xlu0 %434
  %v436 = vsel %vm62, %v336, 0.0
  %437 = vadd.xlane.f32.xlu0 %v436
  %v438 = vpop.xlane.xlu0 %437
  %v439 = vsel %vm62, %v337, 0.0
  %440 = vadd.xlane.f32.xlu0 %v439
  %v441 = vpop.xlane.xlu0 %440
  %v442 = vsel %vm62, %v338, 0.0
  %443 = vadd.xlane.f32.xlu0 %v442
  %v444 = vpop.xlane.xlu0 %443
  %v445 = vsel %vm62, %v339, 0.0
  %446 = vadd.xlane.f32.xlu0 %v445
  %v447 = vpop.xlane.xlu0 %446
  %v448 = vsel %vm62, %v340, 0.0
  %449 = vadd.xlane.f32.xlu0 %v448
  %v450 = vpop.xlane.xlu0 %449
  %v451 = vsel %vm62, %v341, 0.0
  %452 = vadd.xlane.f32.xlu0 %v451
  %v453 = vpop.xlane.xlu0 %452
  %v454 = vsel %vm62, %v342, 0.0
  %455 = vadd.xlane.f32.xlu0 %v454
  %v456 = vpop.xlane.xlu0 %455
  %v457 = vsel %vm62, %v343, 0.0
  %458 = vadd.xlane.f32.xlu0 %v457
  %v459 = vpop.xlane.xlu0 %458
  %v460 = vsel %vm62, %v344, 0.0
  %461 = vadd.xlane.f32.xlu0 %v460
  %v462 = vpop.xlane.xlu0 %461
  %v463 = vsel %vm62, %v345, 0.0
  %464 = vadd.xlane.f32.xlu0 %v463
  %v465 = vpop.xlane.xlu0 %464
  %v466 = vsel %vm62, %v346, 0.0
  %467 = vadd.xlane.f32.xlu0 %v466
  %v468 = vpop.xlane.xlu0 %467
  %v469 = vsel %vm62, %v347, 0.0
  %470 = vadd.xlane.f32.xlu0 %v469
  %v471 = vpop.xlane.xlu0 %470
  %v472 = vsel %vm62, %v348, 0.0
  %473 = vadd.xlane.f32.xlu0 %v472
  %v474 = vpop.xlane.xlu0 %473
  %v475 = vsel %vm62, %v349, 0.0
  %476 = vadd.xlane.f32.xlu0 %v475
  %v477 = vpop.xlane.xlu0 %476
  %v478 = vsel %vm62, %v350, 0.0
  %479 = vadd.xlane.f32.xlu0 %v478
  %v480 = vpop.xlane.xlu0 %479
  %v481 = vsel %vm62, %v351, 0.0
  %482 = vadd.xlane.f32.xlu0 %v481
  %v483 = vpop.xlane.xlu0 %482
  %v484 = vsel %vm62, %v352, 0.0
  %485 = vadd.xlane.f32.xlu0 %v484
  %v486 = vpop.xlane.xlu0 %485
  %v487 = vsel %vm62, %v353, 0.0
  %488 = vadd.xlane.f32.xlu0 %v487
  %v489 = vpop.xlane.xlu0 %488
  %v490 = vsel %vm62, %v354, 0.0
  %491 = vadd.xlane.f32.xlu0 %v490
  %v492 = vpop.xlane.xlu0 %491
  %v493 = vsel %vm62, %v355, 0.0
  %494 = vadd.xlane.f32.xlu0 %v493
  %v495 = vpop.xlane.xlu0 %494
  %v496 = vsel %vm62, %v356, 0.0
  %497 = vadd.xlane.f32.xlu0 %v496
  %v498 = vpop.xlane.xlu0 %497
  %v499 = vsel %vm62, %v357, 0.0
  %500 = vadd.xlane.f32.xlu0 %v499
  %v501 = vpop.xlane.xlu0 %500
  %v502 = vmul.f32 %v360, %v213
  %v503 = vmul.f32 %v363, %v213
  %v504 = vmul.f32 %v366, %v213
  %v505 = vmul.f32 %v369, %v213
  %v506 = vmul.f32 %v372, %v213
  %v507 = vmul.f32 %v375, %v213
  %v508 = vmul.f32 %v378, %v213
  %v509 = vmul.f32 %v381, %v213
  %v510 = vmul.f32 %v384, %v213
  %v511 = vmul.f32 %v387, %v213
  %v512 = vmul.f32 %v390, %v213
  %v513 = vmul.f32 %v393, %v213
  %v514 = vmul.f32 %v396, %v213
  %v515 = vmul.f32 %v399, %v213
  %v516 = vmul.f32 %v402, %v213
  %v517 = vmul.f32 %v405, %v213
  %v518 = vmul.f32 %v408, %v213
  %v519 = vmul.f32 %v411, %v213
  %v520 = vmul.f32 %v414, %v213
  %v521 = vmul.f32 %v417, %v213
  %v522 = vmul.f32 %v420, %v213
  %v523 = vmul.f32 %v423, %v213
  %v524 = vmul.f32 %v426, %v213
  %v525 = vmul.f32 %v429, %v213
  %v526 = vmul.f32 %v432, %v213
  %v527 = vmul.f32 %v435, %v213
  %v528 = vmul.f32 %v438, %v213
  %v529 = vmul.f32 %v441, %v213
  %v530 = vmul.f32 %v444, %v213
  %v531 = vmul.f32 %v447, %v213
  %v532 = vmul.f32 %v450, %v213
  %v533 = vmul.f32 %v453, %v213
  %v534 = vmul.f32 %v456, %v213
  %v535 = vmul.f32 %v459, %v213
  %v536 = vmul.f32 %v462, %v213
  %v537 = vmul.f32 %v465, %v213
  %v538 = vmul.f32 %v468, %v213
  %v539 = vmul.f32 %v471, %v213
  %v540 = vmul.f32 %v474, %v213
  %v541 = vmul.f32 %v477, %v213
  %v542 = vmul.f32 %v480, %v213
  %v543 = vmul.f32 %v483, %v213
  %v544 = vmul.f32 %v486, %v213
  %v545 = vmul.f32 %v489, %v213
  %v546 = vmul.f32 %v492, %v213
  %v547 = vmul.f32 %v495, %v213
  %v548 = vmul.f32 %v498, %v213
  %v549 = vmul.f32 %v501, %v213
  %v550 = vadd.f32 %v502, 0.001
  %v551 = vadd.f32 %v503, 0.001
  %v552 = vadd.f32 %v504, 0.001
  %v553 = vadd.f32 %v505, 0.001
  %v554 = vadd.f32 %v506, 0.001
  %v555 = vadd.f32 %v507, 0.001
  %v556 = vadd.f32 %v508, 0.001
  %v557 = vadd.f32 %v509, 0.001
  %v558 = vadd.f32 %v510, 0.001
  %v559 = vadd.f32 %v511, 0.001
  %v560 = vadd.f32 %v512, 0.001
  %v561 = vadd.f32 %v513, 0.001
  %v562 = vadd.f32 %v514, 0.001
  %v563 = vadd.f32 %v515, 0.001
  %v564 = vadd.f32 %v516, 0.001
  %v565 = vadd.f32 %v517, 0.001
  %v566 = vadd.f32 %v518, 0.001
  %v567 = vadd.f32 %v519, 0.001
  %v568 = vadd.f32 %v520, 0.001
  %v569 = vadd.f32 %v521, 0.001
  %v570 = vadd.f32 %v522, 0.001
  %v571 = vadd.f32 %v523, 0.001
  %v572 = vadd.f32 %v524, 0.001
  %v573 = vadd.f32 %v525, 0.001
  %v574 = vadd.f32 %v526, 0.001
  %v575 = vadd.f32 %v527, 0.001
  %v576 = vadd.f32 %v528, 0.001
  %v577 = vadd.f32 %v529, 0.001
  %v578 = vadd.f32 %v530, 0.001
  %v579 = vadd.f32 %v531, 0.001
  %v580 = vadd.f32 %v532, 0.001
  %v581 = vadd.f32 %v533, 0.001
  %v582 = vadd.f32 %v534, 0.001
  %v583 = vadd.f32 %v535, 0.001
  %v584 = vadd.f32 %v536, 0.001
  %v585 = vadd.f32 %v537, 0.001
  %v586 = vadd.f32 %v538, 0.001
  %v587 = vadd.f32 %v539, 0.001
  %v588 = vadd.f32 %v540, 0.001
  %v589 = vadd.f32 %v541, 0.001
  %v590 = vadd.f32 %v542, 0.001
  %v591 = vadd.f32 %v543, 0.001
  %v592 = vadd.f32 %v544, 0.001
  %v593 = vadd.f32 %v545, 0.001
  %v594 = vadd.f32 %v546, 0.001
  %v595 = vadd.f32 %v547, 0.001
  %v596 = vadd.f32 %v548, 0.001
  %v597 = vadd.f32 %v549, 0.001
  %v598 = vrsqrt.pop %v550
  %v599 = vmul.f32 %v598, %v550
  %v600 = vmul.f32 %v599, %v598
  %v601 = vmul.f32 0.5, %v600
  %v602 = vsub.f32 1.5, %v601
  %v603 = vmul.f32 %v598, %v602
  %vm604 = vweird.f32 %v550
  %vm605 = vweird.f32 %v598
  %vm606 = vmor %vm604, %vm605
  %v607 = vsel %vm606, %v598, %v603
  %v608 = vrsqrt.pop %v551
  %v609 = vmul.f32 %v608, %v551
  %v610 = vmul.f32 %v609, %v608
  %v611 = vmul.f32 0.5, %v610
  %v612 = vsub.f32 1.5, %v611
  %v613 = vmul.f32 %v608, %v612
  %vm614 = vweird.f32 %v551
  %vm615 = vweird.f32 %v608
  %vm616 = vmor %vm614, %vm615
  %v617 = vsel %vm616, %v608, %v613
  %v618 = vrsqrt.pop %v552
  %v619 = vmul.f32 %v618, %v552
  %v620 = vmul.f32 %v619, %v618
  %v621 = vmul.f32 0.5, %v620
  %v622 = vsub.f32 1.5, %v621
  %v623 = vmul.f32 %v618, %v622
  %vm624 = vweird.f32 %v552
  %vm625 = vweird.f32 %v618
  %vm626 = vmor %vm624, %vm625
  %v627 = vsel %vm626, %v618, %v623
  %v628 = vrsqrt.pop %v553
  %v629 = vmul.f32 %v628, %v553
  %v630 = vmul.f32 %v629, %v628
  %v631 = vmul.f32 0.5, %v630
  %v632 = vsub.f32 1.5, %v631
  %v633 = vmul.f32 %v628, %v632
  %vm634 = vweird.f32 %v553
  %vm635 = vweird.f32 %v628
  %vm636 = vmor %vm634, %vm635
  %v637 = vsel %vm636, %v628, %v633
  %v638 = vrsqrt.pop %v554
  %v639 = vmul.f32 %v638, %v554
  %v640 = vmul.f32 %v639, %v638
  %v641 = vmul.f32 0.5, %v640
  %v642 = vsub.f32 1.5, %v641
  %v643 = vmul.f32 %v638, %v642
  %vm644 = vweird.f32 %v554
  %vm645 = vweird.f32 %v638
  %vm646 = vmor %vm644, %vm645
  %v647 = vsel %vm646, %v638, %v643
  %v648 = vrsqrt.pop %v555
  %v649 = vmul.f32 %v648, %v555
  %v650 = vmul.f32 %v649, %v648
  %v651 = vmul.f32 0.5, %v650
  %v652 = vsub.f32 1.5, %v651
  %v653 = vmul.f32 %v648, %v652
  %vm654 = vweird.f32 %v555
  %vm655 = vweird.f32 %v648
  %vm656 = vmor %vm654, %vm655
  %v657 = vsel %vm656, %v648, %v653
  %v658 = vrsqrt.pop %v556
  %v659 = vmul.f32 %v658, %v556
  %v660 = vmul.f32 %v659, %v658
  %v661 = vmul.f32 0.5, %v660
  %v662 = vsub.f32 1.5, %v661
  %v663 = vmul.f32 %v658, %v662
  %vm664 = vweird.f32 %v556
  %vm665 = vweird.f32 %v658
  %vm666 = vmor %vm664, %vm665
  %v667 = vsel %vm666, %v658, %v663
  %v668 = vrsqrt.pop %v557
  %v669 = vmul.f32 %v668, %v557
  %v670 = vmul.f32 %v669, %v668
  %v671 = vmul.f32 0.5, %v670
  %v672 = vsub.f32 1.5, %v671
  %v673 = vmul.f32 %v668, %v672
  %vm674 = vweird.f32 %v557
  %vm675 = vweird.f32 %v668
  %vm676 = vmor %vm674, %vm675
  %v677 = vsel %vm676, %v668, %v673
  %v678 = vrsqrt.pop %v558
  %v679 = vmul.f32 %v678, %v558
  %v680 = vmul.f32 %v679, %v678
  %v681 = vmul.f32 0.5, %v680
  %v682 = vsub.f32 1.5, %v681
  %v683 = vmul.f32 %v678, %v682
  %vm684 = vweird.f32 %v558
  %vm685 = vweird.f32 %v678
  %vm686 = vmor %vm684, %vm685
  %v687 = vsel %vm686, %v678, %v683
  %v688 = vrsqrt.pop %v559
  %v689 = vmul.f32 %v688, %v559
  %v690 = vmul.f32 %v689, %v688
  %v691 = vmul.f32 0.5, %v690
  %v692 = vsub.f32 1.5, %v691
  %v693 = vmul.f32 %v688, %v692
  %vm694 = vweird.f32 %v559
  %vm695 = vweird.f32 %v688
  %vm696 = vmor %vm694, %vm695
  %v697 = vsel %vm696, %v688, %v693
  %v698 = vrsqrt.pop %v560
  %v699 = vmul.f32 %v698, %v560
  %v700 = vmul.f32 %v699, %v698
  %v701 = vmul.f32 0.5, %v700
  %v702 = vsub.f32 1.5, %v701
  %v703 = vmul.f32 %v698, %v702
  %vm704 = vweird.f32 %v560
  %vm705 = vweird.f32 %v698
  %vm706 = vmor %vm704, %vm705
  %v707 = vsel %vm706, %v698, %v703
  %v708 = vrsqrt.pop %v561
  %v709 = vmul.f32 %v708, %v561
  %v710 = vmul.f32 %v709, %v708
  %v711 = vmul.f32 0.5, %v710
  %v712 = vsub.f32 1.5, %v711
  %v713 = vmul.f32 %v708, %v712
  %vm714 = vweird.f32 %v561
  %vm715 = vweird.f32 %v708
  %vm716 = vmor %vm714, %vm715
  %v717 = vsel %vm716, %v708, %v713
  %v718 = vrsqrt.pop %v562
  %v719 = vmul.f32 %v718, %v562
  %v720 = vmul.f32 %v719, %v718
  %v721 = vmul.f32 0.5, %v720
  %v722 = vsub.f32 1.5, %v721
  %v723 = vmul.f32 %v718, %v722
  %vm724 = vweird.f32 %v562
  %vm725 = vweird.f32 %v718
  %vm726 = vmor %vm724, %vm725
  %v727 = vsel %vm726, %v718, %v723
  %v728 = vrsqrt.pop %v563
  %v729 = vmul.f32 %v728, %v563
  %v730 = vmul.f32 %v729, %v728
  %v731 = vmul.f32 0.5, %v730
  %v732 = vsub.f32 1.5, %v731
  %v733 = vmul.f32 %v728, %v732
  %vm734 = vweird.f32 %v563
  %vm735 = vweird.f32 %v728
  %vm736 = vmor %vm734, %vm735
  %v737 = vsel %vm736, %v728, %v733
  %v738 = vrsqrt.pop %v564
  %v739 = vmul.f32 %v738, %v564
  %v740 = vmul.f32 %v739, %v738
  %v741 = vmul.f32 0.5, %v740
  %v742 = vsub.f32 1.5, %v741
  %v743 = vmul.f32 %v738, %v742
  %vm744 = vweird.f32 %v564
  %vm745 = vweird.f32 %v738
  %vm746 = vmor %vm744, %vm745
  %v747 = vsel %vm746, %v738, %v743
  %v748 = vrsqrt.pop %v565
  %v749 = vmul.f32 %v748, %v565
  %v750 = vmul.f32 %v749, %v748
  %v751 = vmul.f32 0.5, %v750
  %v752 = vsub.f32 1.5, %v751
  %v753 = vmul.f32 %v748, %v752
  %vm754 = vweird.f32 %v565
  %vm755 = vweird.f32 %v748
  %vm756 = vmor %vm754, %vm755
  %v757 = vsel %vm756, %v748, %v753
  %v758 = vrsqrt.pop %v566
  %v759 = vmul.f32 %v758, %v566
  %v760 = vmul.f32 %v759, %v758
  %v761 = vmul.f32 0.5, %v760
  %v762 = vsub.f32 1.5, %v761
  %v763 = vmul.f32 %v758, %v762
  %vm764 = vweird.f32 %v566
  %vm765 = vweird.f32 %v758
  %vm766 = vmor %vm764, %vm765
  %v767 = vsel %vm766, %v758, %v763
  %v768 = vrsqrt.pop %v567
  %v769 = vmul.f32 %v768, %v567
  %v770 = vmul.f32 %v769, %v768
  %v771 = vmul.f32 0.5, %v770
  %v772 = vsub.f32 1.5, %v771
  %v773 = vmul.f32 %v768, %v772
  %vm774 = vweird.f32 %v567
  %vm775 = vweird.f32 %v768
  %vm776 = vmor %vm774, %vm775
  %v777 = vsel %vm776, %v768, %v773
  %v778 = vrsqrt.pop %v568
  %v779 = vmul.f32 %v778, %v568
  %v780 = vmul.f32 %v779, %v778
  %v781 = vmul.f32 0.5, %v780
  %v782 = vsub.f32 1.5, %v781
  %v783 = vmul.f32 %v778, %v782
  %vm784 = vweird.f32 %v568
  %vm785 = vweird.f32 %v778
  %vm786 = vmor %vm784, %vm785
  %v787 = vsel %vm786, %v778, %v783
  %v788 = vrsqrt.pop %v569
  %v789 = vmul.f32 %v788, %v569
  %v790 = vmul.f32 %v789, %v788
  %v791 = vmul.f32 0.5, %v790
  %v792 = vsub.f32 1.5, %v791
  %v793 = vmul.f32 %v788, %v792
  %vm794 = vweird.f32 %v569
  %vm795 = vweird.f32 %v788
  %vm796 = vmor %vm794, %vm795
  %v797 = vsel %vm796, %v788, %v793
  %v798 = vrsqrt.pop %v570
  %v799 = vmul.f32 %v798, %v570
  %v800 = vmul.f32 %v799, %v798
  %v801 = vmul.f32 0.5, %v800
  %v802 = vsub.f32 1.5, %v801
  %v803 = vmul.f32 %v798, %v802
  %vm804 = vweird.f32 %v570
  %vm805 = vweird.f32 %v798
  %vm806 = vmor %vm804, %vm805
  %v807 = vsel %vm806, %v798, %v803
  %v808 = vrsqrt.pop %v571
  %v809 = vmul.f32 %v808, %v571
  %v810 = vmul.f32 %v809, %v808
  %v811 = vmul.f32 0.5, %v810
  %v812 = vsub.f32 1.5, %v811
  %v813 = vmul.f32 %v808, %v812
  %vm814 = vweird.f32 %v571
  %vm815 = vweird.f32 %v808
  %vm816 = vmor %vm814, %vm815
  %v817 = vsel %vm816, %v808, %v813
  %v818 = vrsqrt.pop %v572
  %v819 = vmul.f32 %v818, %v572
  %v820 = vmul.f32 %v819, %v818
  %v821 = vmul.f32 0.5, %v820
  %v822 = vsub.f32 1.5, %v821
  %v823 = vmul.f32 %v818, %v822
  %vm824 = vweird.f32 %v572
  %vm825 = vweird.f32 %v818
  %vm826 = vmor %vm824, %vm825
  %v827 = vsel %vm826, %v818, %v823
  %v828 = vrsqrt.pop %v573
  %v829 = vmul.f32 %v828, %v573
  %v830 = vmul.f32 %v829, %v828
  %v831 = vmul.f32 0.5, %v830
  %v832 = vsub.f32 1.5, %v831
  %v833 = vmul.f32 %v828, %v832
  %vm834 = vweird.f32 %v573
  %vm835 = vweird.f32 %v828
  %vm836 = vmor %vm834, %vm835
  %v837 = vsel %vm836, %v828, %v833
  %v838 = vrsqrt.pop %v574
  %v839 = vmul.f32 %v838, %v574
  %v840 = vmul.f32 %v839, %v838
  %v841 = vmul.f32 0.5, %v840
  %v842 = vsub.f32 1.5, %v841
  %v843 = vmul.f32 %v838, %v842
  %vm844 = vweird.f32 %v574
  %vm845 = vweird.f32 %v838
  %vm846 = vmor %vm844, %vm845
  %v847 = vsel %vm846, %v838, %v843
  %v848 = vrsqrt.pop %v575
  %v849 = vmul.f32 %v848, %v575
  %v850 = vmul.f32 %v849, %v848
  %v851 = vmul.f32 0.5, %v850
  %v852 = vsub.f32 1.5, %v851
  %v853 = vmul.f32 %v848, %v852
  %vm854 = vweird.f32 %v575
  %vm855 = vweird.f32 %v848
  %vm856 = vmor %vm854, %vm855
  %v857 = vsel %vm856, %v848, %v853
  %v858 = vrsqrt.pop %v576
  %v859 = vmul.f32 %v858, %v576
  %v860 = vmul.f32 %v859, %v858
  %v861 = vmul.f32 0.5, %v860
  %v862 = vsub.f32 1.5, %v861
  %v863 = vmul.f32 %v858, %v862
  %vm864 = vweird.f32 %v576
  %vm865 = vweird.f32 %v858
  %vm866 = vmor %vm864, %vm865
  %v867 = vsel %vm866, %v858, %v863
  %v868 = vrsqrt.pop %v577
  %v869 = vmul.f32 %v868, %v577
  %v870 = vmul.f32 %v869, %v868
  %v871 = vmul.f32 0.5, %v870
  %v872 = vsub.f32 1.5, %v871
  %v873 = vmul.f32 %v868, %v872
  %vm874 = vweird.f32 %v577
  %vm875 = vweird.f32 %v868
  %vm876 = vmor %vm874, %vm875
  %v877 = vsel %vm876, %v868, %v873
  %v878 = vrsqrt.pop %v578
  %v879 = vmul.f32 %v878, %v578
  %v880 = vmul.f32 %v879, %v878
  %v881 = vmul.f32 0.5, %v880
  %v882 = vsub.f32 1.5, %v881
  %v883 = vmul.f32 %v878, %v882
  %vm884 = vweird.f32 %v578
  %vm885 = vweird.f32 %v878
  %vm886 = vmor %vm884, %vm885
  %v887 = vsel %vm886, %v878, %v883
  %v888 = vrsqrt.pop %v579
  %v889 = vmul.f32 %v888, %v579
  %v890 = vmul.f32 %v889, %v888
  %v891 = vmul.f32 0.5, %v890
  %v892 = vsub.f32 1.5, %v891
  %v893 = vmul.f32 %v888, %v892
  %vm894 = vweird.f32 %v579
  %vm895 = vweird.f32 %v888
  %vm896 = vmor %vm894, %vm895
  %v897 = vsel %vm896, %v888, %v893
  %v898 = vrsqrt.pop %v580
  %v899 = vmul.f32 %v898, %v580
  %v900 = vmul.f32 %v899, %v898
  %v901 = vmul.f32 0.5, %v900
  %v902 = vsub.f32 1.5, %v901
  %v903 = vmul.f32 %v898, %v902
  %vm904 = vweird.f32 %v580
  %vm905 = vweird.f32 %v898
  %vm906 = vmor %vm904, %vm905
  %v907 = vsel %vm906, %v898, %v903
  %v908 = vrsqrt.pop %v581
  %v909 = vmul.f32 %v908, %v581
  %v910 = vmul.f32 %v909, %v908
  %v911 = vmul.f32 0.5, %v910
  %v912 = vsub.f32 1.5, %v911
  %v913 = vmul.f32 %v908, %v912
  %vm914 = vweird.f32 %v581
  %vm915 = vweird.f32 %v908
  %vm916 = vmor %vm914, %vm915
  %v917 = vsel %vm916, %v908, %v913
  %v918 = vrsqrt.pop %v582
  %v919 = vmul.f32 %v918, %v582
  %v920 = vmul.f32 %v919, %v918
  %v921 = vmul.f32 0.5, %v920
  %v922 = vsub.f32 1.5, %v921
  %v923 = vmul.f32 %v918, %v922
  %vm924 = vweird.f32 %v582
  %vm925 = vweird.f32 %v918
  %vm926 = vmor %vm924, %vm925
  %v927 = vsel %vm926, %v918, %v923
  %v928 = vrsqrt.pop %v583
  %v929 = vmul.f32 %v928, %v583
  %v930 = vmul.f32 %v929, %v928
  %v931 = vmul.f32 0.5, %v930
  %v932 = vsub.f32 1.5, %v931
  %v933 = vmul.f32 %v928, %v932
  %vm934 = vweird.f32 %v583
  %vm935 = vweird.f32 %v928
  %vm936 = vmor %vm934, %vm935
  %v937 = vsel %vm936, %v928, %v933
  %v938 = vrsqrt.pop %v584
  %v939 = vmul.f32 %v938, %v584
  %v940 = vmul.f32 %v939, %v938
  %v941 = vmul.f32 0.5, %v940
  %v942 = vsub.f32 1.5, %v941
  %v943 = vmul.f32 %v938, %v942
  %vm944 = vweird.f32 %v584
  %vm945 = vweird.f32 %v938
  %vm946 = vmor %vm944, %vm945
  %v947 = vsel %vm946, %v938, %v943
  %v948 = vrsqrt.pop %v585
  %v949 = vmul.f32 %v948, %v585
  %v950 = vmul.f32 %v949, %v948
  %v951 = vmul.f32 0.5, %v950
  %v952 = vsub.f32 1.5, %v951
  %v953 = vmul.f32 %v948, %v952
  %vm954 = vweird.f32 %v585
  %vm955 = vweird.f32 %v948
  %vm956 = vmor %vm954, %vm955
  %v957 = vsel %vm956, %v948, %v953
  %v958 = vrsqrt.pop %v586
  %v959 = vmul.f32 %v958, %v586
  %v960 = vmul.f32 %v959, %v958
  %v961 = vmul.f32 0.5, %v960
  %v962 = vsub.f32 1.5, %v961
  %v963 = vmul.f32 %v958, %v962
  %vm964 = vweird.f32 %v586
  %vm965 = vweird.f32 %v958
  %vm966 = vmor %vm964, %vm965
  %v967 = vsel %vm966, %v958, %v963
  %v968 = vrsqrt.pop %v587
  %v969 = vmul.f32 %v968, %v587
  %v970 = vmul.f32 %v969, %v968
  %v971 = vmul.f32 0.5, %v970
  %v972 = vsub.f32 1.5, %v971
  %v973 = vmul.f32 %v968, %v972
  %vm974 = vweird.f32 %v587
  %vm975 = vweird.f32 %v968
  %vm976 = vmor %vm974, %vm975
  %v977 = vsel %vm976, %v968, %v973
  %v978 = vrsqrt.pop %v588
  %v979 = vmul.f32 %v978, %v588
  %v980 = vmul.f32 %v979, %v978
  %v981 = vmul.f32 0.5, %v980
  %v982 = vsub.f32 1.5, %v981
  %v983 = vmul.f32 %v978, %v982
  %vm984 = vweird.f32 %v588
  %vm985 = vweird.f32 %v978
  %vm986 = vmor %vm984, %vm985
  %v987 = vsel %vm986, %v978, %v983
  %v988 = vrsqrt.pop %v589
  %v989 = vmul.f32 %v988, %v589
  %v990 = vmul.f32 %v989, %v988
  %v991 = vmul.f32 0.5, %v990
  %v992 = vsub.f32 1.5, %v991
  %v993 = vmul.f32 %v988, %v992
  %vm994 = vweird.f32 %v589
  %vm995 = vweird.f32 %v988
  %vm996 = vmor %vm994, %vm995
  %v997 = vsel %vm996, %v988, %v993
  %v998 = vrsqrt.pop %v590
  %v999 = vmul.f32 %v998, %v590
  %v1000 = vmul.f32 %v999, %v998
  %v1001 = vmul.f32 0.5, %v1000
  %v1002 = vsub.f32 1.5, %v1001
  %v1003 = vmul.f32 %v998, %v1002
  %vm1004 = vweird.f32 %v590
  %vm1005 = vweird.f32 %v998
  %vm1006 = vmor %vm1004, %vm1005
  %v1007 = vsel %vm1006, %v998, %v1003
  %v1008 = vrsqrt.pop %v591
  %v1009 = vmul.f32 %v1008, %v591
  %v1010 = vmul.f32 %v1009, %v1008
  %v1011 = vmul.f32 0.5, %v1010
  %v1012 = vsub.f32 1.5, %v1011
  %v1013 = vmul.f32 %v1008, %v1012
  %vm1014 = vweird.f32 %v591
  %vm1015 = vweird.f32 %v1008
  %vm1016 = vmor %vm1014, %vm1015
  %v1017 = vsel %vm1016, %v1008, %v1013
  %v1018 = vrsqrt.pop %v592
  %v1019 = vmul.f32 %v1018, %v592
  %v1020 = vmul.f32 %v1019, %v1018
  %v1021 = vmul.f32 0.5, %v1020
  %v1022 = vsub.f32 1.5, %v1021
  %v1023 = vmul.f32 %v1018, %v1022
  %vm1024 = vweird.f32 %v592
  %vm1025 = vweird.f32 %v1018
  %vm1026 = vmor %vm1024, %vm1025
  %v1027 = vsel %vm1026, %v1018, %v1023
  %v1028 = vrsqrt.pop %v593
  %v1029 = vmul.f32 %v1028, %v593
  %v1030 = vmul.f32 %v1029, %v1028
  %v1031 = vmul.f32 0.5, %v1030
  %v1032 = vsub.f32 1.5, %v1031
  %v1033 = vmul.f32 %v1028, %v1032
  %vm1034 = vweird.f32 %v593
  %vm1035 = vweird.f32 %v1028
  %vm1036 = vmor %vm1034, %vm1035
  %v1037 = vsel %vm1036, %v1028, %v1033
  %v1038 = vrsqrt.pop %v594
  %v1039 = vmul.f32 %v1038, %v594
  %v1040 = vmul.f32 %v1039, %v1038
  %v1041 = vmul.f32 0.5, %v1040
  %v1042 = vsub.f32 1.5, %v1041
  %v1043 = vmul.f32 %v1038, %v1042
  %vm1044 = vweird.f32 %v594
  %vm1045 = vweird.f32 %v1038
  %vm1046 = vmor %vm1044, %vm1045
  %v1047 = vsel %vm1046, %v1038, %v1043
  %v1048 = vrsqrt.pop %v595
  %v1049 = vmul.f32 %v1048, %v595
  %v1050 = vmul.f32 %v1049, %v1048
  %v1051 = vmul.f32 0.5, %v1050
  %v1052 = vsub.f32 1.5, %v1051
  %v1053 = vmul.f32 %v1048, %v1052
  %vm1054 = vweird.f32 %v595
  %vm1055 = vweird.f32 %v1048
  %vm1056 = vmor %vm1054, %vm1055
  %v1057 = vsel %vm1056, %v1048, %v1053
  %v1058 = vrsqrt.pop %v596
  %v1059 = vmul.f32 %v1058, %v596
  %v1060 = vmul.f32 %v1059, %v1058
  %v1061 = vmul.f32 0.5, %v1060
  %v1062 = vsub.f32 1.5, %v1061
  %v1063 = vmul.f32 %v1058, %v1062
  %vm1064 = vweird.f32 %v596
  %vm1065 = vweird.f32 %v1058
  %vm1066 = vmor %vm1064, %vm1065
  %v1067 = vsel %vm1066, %v1058, %v1063
  %v1068 = vrsqrt.pop %v597
  %v1069 = vmul.f32 %v1068, %v597
  %v1070 = vmul.f32 %v1069, %v1068
  %v1071 = vmul.f32 0.5, %v1070
  %v1072 = vsub.f32 1.5, %v1071
  %v1073 = vmul.f32 %v1068, %v1072
  %vm1074 = vweird.f32 %v597
  %vm1075 = vweird.f32 %v1068
  %vm1076 = vmor %vm1074, %vm1075
  %v1077 = vsel %vm1076, %v1068, %v1073
  %v1078 = vld [vmem:[%s1] sm:$0xff]
  %v1079 = vld [vmem:[%s1 + $0x8] sm:$0xff]
  %v1080 = vld [vmem:[%s1 + $0x10] sm:$0xff]
  %v1081 = vld [vmem:[%s1 + $0x18] sm:$0xff]
  %v1082 = vld [vmem:[%s1 + $0x20] sm:$0xff]
  %v1083 = vld [vmem:[%s1 + $0x28] sm:$0xff]
  %v1084 = vld [vmem:[%s1 + $0x30] sm:$0xff]
  %v1085 = vld [vmem:[%s1 + $0x38] sm:$0xff]
  %v1086 = vld [vmem:[%s1 + $0x40] sm:$0xff]
  %v1087 = vld [vmem:[%s1 + $0x48] sm:$0xff]
  %v1088 = vld [vmem:[%s1 + $0x50] sm:$0xff]
  %v1089 = vld [vmem:[%s1 + $0x58] sm:$0xff]
  %v1090 = vld [vmem:[%s1 + $0x60] sm:$0xff]
  %v1091 = vld [vmem:[%s1 + $0x68] sm:$0xff]
  %v1092 = vld [vmem:[%s1 + $0x70] sm:$0xff]
  %v1093 = vld [vmem:[%s1 + $0x78] sm:$0xff]
  %v1094 = vld [vmem:[%s1 + $0x80] sm:$0xff]
  %v1095 = vld [vmem:[%s1 + $0x88] sm:$0xff]
  %v1096 = vld [vmem:[%s1 + $0x90] sm:$0xff]
  %v1097 = vld [vmem:[%s1 + $0x98] sm:$0xff]
  %v1098 = vld [vmem:[%s1 + $0xa0] sm:$0xff]
  %v1099 = vld [vmem:[%s1 + $0xa8] sm:$0xff]
  %v1100 = vld [vmem:[%s1 + $0xb0] sm:$0xff]
  %v1101 = vld [vmem:[%s1 + $0xb8] sm:$0xff]
  %v1102 = vld [vmem:[%s1 + $0xc0] sm:$0xff]
  %v1103 = vld [vmem:[%s1 + $0xc8] sm:$0xff]
  %v1104 = vld [vmem:[%s1 + $0xd0] sm:$0xff]
  %v1105 = vld [vmem:[%s1 + $0xd8] sm:$0xff]
  %v1106 = vld [vmem:[%s1 + $0xe0] sm:$0xff]
  %v1107 = vld [vmem:[%s1 + $0xe8] sm:$0xff]
  %v1108 = vld [vmem:[%s1 + $0xf0] sm:$0xff]
  %v1109 = vld [vmem:[%s1 + $0xf8] sm:$0xff]
  %v1110 = vld [vmem:[%s1 + $0x100] sm:$0xff]
  %v1111 = vld [vmem:[%s1 + $0x108] sm:$0xff]
  %v1112 = vld [vmem:[%s1 + $0x110] sm:$0xff]
  %v1113 = vld [vmem:[%s1 + $0x118] sm:$0xff]
  %v1114 = vld [vmem:[%s1 + $0x120] sm:$0xff]
  %v1115 = vld [vmem:[%s1 + $0x128] sm:$0xff]
  %v1116 = vld [vmem:[%s1 + $0x130] sm:$0xff]
  %v1117 = vld [vmem:[%s1 + $0x138] sm:$0xff]
  %v1118 = vld [vmem:[%s1 + $0x140] sm:$0xff]
  %v1119 = vld [vmem:[%s1 + $0x148] sm:$0xff]
  %v1120 = vld [vmem:[%s1 + $0x150] sm:$0xff]
  %v1121 = vld [vmem:[%s1 + $0x158] sm:$0xff]
  %v1122 = vld [vmem:[%s1 + $0x160] sm:$0xff]
  %v1123 = vld [vmem:[%s1 + $0x168] sm:$0xff]
  %v1124 = vld [vmem:[%s1 + $0x170] sm:$0xff]
  %v1125 = vld [vmem:[%s1 + $0x178] sm:$0xff]
  %v1126 = vmul.f32 %v607, %v1078
  %v1127 = vmul.f32 %v617, %v1079
  %v1128 = vmul.f32 %v627, %v1080
  %v1129 = vmul.f32 %v637, %v1081
  %v1130 = vmul.f32 %v647, %v1082
  %v1131 = vmul.f32 %v657, %v1083
  %v1132 = vmul.f32 %v667, %v1084
  %v1133 = vmul.f32 %v677, %v1085
  %v1134 = vmul.f32 %v687, %v1086
  %v1135 = vmul.f32 %v697, %v1087
  %v1136 = vmul.f32 %v707, %v1088
  %v1137 = vmul.f32 %v717, %v1089
  %v1138 = vmul.f32 %v727, %v1090
  %v1139 = vmul.f32 %v737, %v1091
  %v1140 = vmul.f32 %v747, %v1092
  %v1141 = vmul.f32 %v757, %v1093
  %v1142 = vmul.f32 %v767, %v1094
  %v1143 = vmul.f32 %v777, %v1095
  %v1144 = vmul.f32 %v787, %v1096
  %v1145 = vmul.f32 %v797, %v1097
  %v1146 = vmul.f32 %v807, %v1098
  %v1147 = vmul.f32 %v817, %v1099
  %v1148 = vmul.f32 %v827, %v1100
  %v1149 = vmul.f32 %v837, %v1101
  %v1150 = vmul.f32 %v847, %v1102
  %v1151 = vmul.f32 %v857, %v1103
  %v1152 = vmul.f32 %v867, %v1104
  %v1153 = vmul.f32 %v877, %v1105
  %v1154 = vmul.f32 %v887, %v1106
  %v1155 = vmul.f32 %v897, %v1107
  %v1156 = vmul.f32 %v907, %v1108
  %v1157 = vmul.f32 %v917, %v1109
  %v1158 = vmul.f32 %v927, %v1110
  %v1159 = vmul.f32 %v937, %v1111
  %v1160 = vmul.f32 %v947, %v1112
  %v1161 = vmul.f32 %v957, %v1113
  %v1162 = vmul.f32 %v967, %v1114
  %v1163 = vmul.f32 %v977, %v1115
  %v1164 = vmul.f32 %v987, %v1116
  %v1165 = vmul.f32 %v997, %v1117
  %v1166 = vmul.f32 %v1007, %v1118
  %v1167 = vmul.f32 %v1017, %v1119
  %v1168 = vmul.f32 %v1027, %v1120
  %v1169 = vmul.f32 %v1037, %v1121
  %v1170 = vmul.f32 %v1047, %v1122
  %v1171 = vmul.f32 %v1057, %v1123
  %v1172 = vmul.f32 %v1067, %v1124
  %v1173 = vmul.f32 %v1077, %v1125
  %v1174 = vld [vmem:[%s2] sm:$0xff]
  %v1175 = vld [vmem:[%s2 + $0x8] sm:$0xff]
  %v1176 = vld [vmem:[%s2 + $0x10] sm:$0xff]
  %v1177 = vld [vmem:[%s2 + $0x18] sm:$0xff]
  %v1178 = vld [vmem:[%s2 + $0x20] sm:$0xff]
  %v1179 = vld [vmem:[%s2 + $0x28] sm:$0xff]
  %v1180 = vld [vmem:[%s2 + $0x30] sm:$0xff]
  %v1181 = vld [vmem:[%s2 + $0x38] sm:$0xff]
  %v1182 = vld [vmem:[%s2 + $0x40] sm:$0xff]
  %v1183 = vld [vmem:[%s2 + $0x48] sm:$0xff]
  %v1184 = vld [vmem:[%s2 + $0x50] sm:$0xff]
  %v1185 = vld [vmem:[%s2 + $0x58] sm:$0xff]
  %v1186 = vld [vmem:[%s2 + $0x60] sm:$0xff]
  %v1187 = vld [vmem:[%s2 + $0x68] sm:$0xff]
  %v1188 = vld [vmem:[%s2 + $0x70] sm:$0xff]
  %v1189 = vld [vmem:[%s2 + $0x78] sm:$0xff]
  %v1190 = vld [vmem:[%s2 + $0x80] sm:$0xff]
  %v1191 = vld [vmem:[%s2 + $0x88] sm:$0xff]
  %v1192 = vld [vmem:[%s2 + $0x90] sm:$0xff]
  %v1193 = vld [vmem:[%s2 + $0x98] sm:$0xff]
  %v1194 = vld [vmem:[%s2 + $0xa0] sm:$0xff]
  %v1195 = vld [vmem:[%s2 + $0xa8] sm:$0xff]
  %v1196 = vld [vmem:[%s2 + $0xb0] sm:$0xff]
  %v1197 = vld [vmem:[%s2 + $0xb8] sm:$0xff]
  %v1198 = vld [vmem:[%s2 + $0xc0] sm:$0xff]
  %v1199 = vld [vmem:[%s2 + $0xc8] sm:$0xff]
  %v1200 = vld [vmem:[%s2 + $0xd0] sm:$0xff]
  %v1201 = vld [vmem:[%s2 + $0xd8] sm:$0xff]
  %v1202 = vld [vmem:[%s2 + $0xe0] sm:$0xff]
  %v1203 = vld [vmem:[%s2 + $0xe8] sm:$0xff]
  %v1204 = vld [vmem:[%s2 + $0xf0] sm:$0xff]
  %v1205 = vld [vmem:[%s2 + $0xf8] sm:$0xff]
  %v1206 = vld [vmem:[%s2 + $0x100] sm:$0xff]
  %v1207 = vld [vmem:[%s2 + $0x108] sm:$0xff]
  %v1208 = vld [vmem:[%s2 + $0x110] sm:$0xff]
  %v1209 = vld [vmem:[%s2 + $0x118] sm:$0xff]
  %v1210 = vld [vmem:[%s2 + $0x120] sm:$0xff]
  %v1211 = vld [vmem:[%s2 + $0x128] sm:$0xff]
  %v1212 = vld [vmem:[%s2 + $0x130] sm:$0xff]
  %v1213 = vld [vmem:[%s2 + $0x138] sm:$0xff]
  %v1214 = vld [vmem:[%s2 + $0x140] sm:$0xff]
  %v1215 = vld [vmem:[%s2 + $0x148] sm:$0xff]
  %v1216 = vld [vmem:[%s2 + $0x150] sm:$0xff]
  %v1217 = vld [vmem:[%s2 + $0x158] sm:$0xff]
  %v1218 = vld [vmem:[%s2 + $0x160] sm:$0xff]
  %v1219 = vld [vmem:[%s2 + $0x168] sm:$0xff]
  %v1220 = vld [vmem:[%s2 + $0x170] sm:$0xff]
  %v1221 = vld [vmem:[%s2 + $0x178] sm:$0xff]
  %v1222 = vmul.f32 %v214, %v1126
  %v1223 = vmul.f32 %v215, %v1127
  %v1224 = vmul.f32 %v216, %v1128
  %v1225 = vmul.f32 %v217, %v1129
  %v1226 = vmul.f32 %v218, %v1130
  %v1227 = vmul.f32 %v219, %v1131
  %v1228 = vmul.f32 %v220, %v1132
  %v1229 = vmul.f32 %v221, %v1133
  %v1230 = vmul.f32 %v222, %v1134
  %v1231 = vmul.f32 %v223, %v1135
  %v1232 = vmul.f32 %v224, %v1136
  %v1233 = vmul.f32 %v225, %v1137
  %v1234 = vmul.f32 %v226, %v1138
  %v1235 = vmul.f32 %v227, %v1139
  %v1236 = vmul.f32 %v228, %v1140
  %v1237 = vmul.f32 %v229, %v1141
  %v1238 = vmul.f32 %v230, %v1142
  %v1239 = vmul.f32 %v231, %v1143
  %v1240 = vmul.f32 %v232, %v1144
  %v1241 = vmul.f32 %v233, %v1145
  %v1242 = vmul.f32 %v234, %v1146
  %v1243 = vmul.f32 %v235, %v1147
  %v1244 = vmul.f32 %v236, %v1148
  %v1245 = vmul.f32 %v237, %v1149
  %v1246 = vmul.f32 %v238, %v1150
  %v1247 = vmul.f32 %v239, %v1151
  %v1248 = vmul.f32 %v240, %v1152
  %v1249 = vmul.f32 %v241, %v1153
  %v1250 = vmul.f32 %v242, %v1154
  %v1251 = vmul.f32 %v243, %v1155
  %v1252 = vmul.f32 %v244, %v1156
  %v1253 = vmul.f32 %v245, %v1157
  %v1254 = vmul.f32 %v246, %v1158
  %v1255 = vmul.f32 %v247, %v1159
  %v1256 = vmul.f32 %v248, %v1160
  %v1257 = vmul.f32 %v249, %v1161
  %v1258 = vmul.f32 %v250, %v1162
  %v1259 = vmul.f32 %v251, %v1163
  %v1260 = vmul.f32 %v252, %v1164
  %v1261 = vmul.f32 %v253, %v1165
  %v1262 = vmul.f32 %v254, %v1166
  %v1263 = vmul.f32 %v255, %v1167
  %v1264 = vmul.f32 %v256, %v1168
  %v1265 = vmul.f32 %v257, %v1169
  %v1266 = vmul.f32 %v258, %v1170
  %v1267 = vmul.f32 %v259, %v1171
  %v1268 = vmul.f32 %v260, %v1172
  %v1269 = vmul.f32 %v261, %v1173
  %v1270 = vsub.f32 %v1174, %v1222
  %v1271 = vsub.f32 %v1175, %v1223
  %v1272 = vsub.f32 %v1176, %v1224
  %v1273 = vsub.f32 %v1177, %v1225
  %v1274 = vsub.f32 %v1178, %v1226
  %v1275 = vsub.f32 %v1179, %v1227
  %v1276 = vsub.f32 %v1180, %v1228
  %v1277 = vsub.f32 %v1181, %v1229
  %v1278 = vsub.f32 %v1182, %v1230
  %v1279 = vsub.f32 %v1183, %v1231
  %v1280 = vsub.f32 %v1184, %v1232
  %v1281 = vsub.f32 %v1185, %v1233
  %v1282 = vsub.f32 %v1186, %v1234
  %v1283 = vsub.f32 %v1187, %v1235
  %v1284 = vsub.f32 %v1188, %v1236
  %v1285 = vsub.f32 %v1189, %v1237
  %v1286 = vsub.f32 %v1190, %v1238
  %v1287 = vsub.f32 %v1191, %v1239
  %v1288 = vsub.f32 %v1192, %v1240
  %v1289 = vsub.f32 %v1193, %v1241
  %v1290 = vsub.f32 %v1194, %v1242
  %v1291 = vsub.f32 %v1195, %v1243
  %v1292 = vsub.f32 %v1196, %v1244
  %v1293 = vsub.f32 %v1197, %v1245
  %v1294 = vsub.f32 %v1198, %v1246
  %v1295 = vsub.f32 %v1199, %v1247
  %v1296 = vsub.f32 %v1200, %v1248
  %v1297 = vsub.f32 %v1201, %v1249
  %v1298 = vsub.f32 %v1202, %v1250
  %v1299 = vsub.f32 %v1203, %v1251
  %v1300 = vsub.f32 %v1204, %v1252
  %v1301 = vsub.f32 %v1205, %v1253
  %v1302 = vsub.f32 %v1206, %v1254
  %v1303 = vsub.f32 %v1207, %v1255
  %v1304 = vsub.f32 %v1208, %v1256
  %v1305 = vsub.f32 %v1209, %v1257
  %v1306 = vsub.f32 %v1210, %v1258
  %v1307 = vsub.f32 %v1211, %v1259
  %v1308 = vsub.f32 %v1212, %v1260
  %v1309 = vsub.f32 %v1213, %v1261
  %v1310 = vsub.f32 %v1214, %v1262
  %v1311 = vsub.f32 %v1215, %v1263
  %v1312 = vsub.f32 %v1216, %v1264
  %v1313 = vsub.f32 %v1217, %v1265
  %v1314 = vsub.f32 %v1218, %v1266
  %v1315 = vsub.f32 %v1219, %v1267
  %v1316 = vsub.f32 %v1220, %v1268
  %v1317 = vsub.f32 %v1221, %v1269
  %1319 = vset.pattern.permute.xlu0 0
  %1320 = vperm.xlu0 %1319, %v1126
  %v1321 = vpop.permute.xlu0 %1320
  %1324 = vset.pattern.permute.xlu0 0
  %1325 = vperm.xlu0 %1324, %v1127
  %v1326 = vpop.permute.xlu0 %1325
  %1329 = vset.pattern.permute.xlu0 0
  %1330 = vperm.xlu0 %1329, %v1128
  %v1331 = vpop.permute.xlu0 %1330
  %1334 = vset.pattern.permute.xlu0 0
  %1335 = vperm.xlu0 %1334, %v1129
  %v1336 = vpop.permute.xlu0 %1335
  %1339 = vset.pattern.permute.xlu0 0
  %1340 = vperm.xlu0 %1339, %v1130
  %v1341 = vpop.permute.xlu0 %1340
  %1344 = vset.pattern.permute.xlu0 0
  %1345 = vperm.xlu0 %1344, %v1131
  %v1346 = vpop.permute.xlu0 %1345
  %1349 = vset.pattern.permute.xlu0 0
  %1350 = vperm.xlu0 %1349, %v1132
  %v1351 = vpop.permute.xlu0 %1350
  %1354 = vset.pattern.permute.xlu0 0
  %1355 = vperm.xlu0 %1354, %v1133
  %v1356 = vpop.permute.xlu0 %1355
  %1359 = vset.pattern.permute.xlu0 0
  %1360 = vperm.xlu0 %1359, %v1134
  %v1361 = vpop.permute.xlu0 %1360
  %1364 = vset.pattern.permute.xlu0 0
  %1365 = vperm.xlu0 %1364, %v1135
  %v1366 = vpop.permute.xlu0 %1365
  %1369 = vset.pattern.permute.xlu0 0
  %1370 = vperm.xlu0 %1369, %v1136
  %v1371 = vpop.permute.xlu0 %1370
  %1374 = vset.pattern.permute.xlu0 0
  %1375 = vperm.xlu0 %1374, %v1137
  %v1376 = vpop.permute.xlu0 %1375
  %1379 = vset.pattern.permute.xlu0 0
  %1380 = vperm.xlu0 %1379, %v1138
  %v1381 = vpop.permute.xlu0 %1380
  %1384 = vset.pattern.permute.xlu0 0
  %1385 = vperm.xlu0 %1384, %v1139
  %v1386 = vpop.permute.xlu0 %1385
  %1389 = vset.pattern.permute.xlu0 0
  %1390 = vperm.xlu0 %1389, %v1140
  %v1391 = vpop.permute.xlu0 %1390
  %1394 = vset.pattern.permute.xlu0 0
  %1395 = vperm.xlu0 %1394, %v1141
  %v1396 = vpop.permute.xlu0 %1395
  %1399 = vset.pattern.permute.xlu0 0
  %1400 = vperm.xlu0 %1399, %v1142
  %v1401 = vpop.permute.xlu0 %1400
  %1404 = vset.pattern.permute.xlu0 0
  %1405 = vperm.xlu0 %1404, %v1143
  %v1406 = vpop.permute.xlu0 %1405
  %1409 = vset.pattern.permute.xlu0 0
  %1410 = vperm.xlu0 %1409, %v1144
  %v1411 = vpop.permute.xlu0 %1410
  %1414 = vset.pattern.permute.xlu0 0
  %1415 = vperm.xlu0 %1414, %v1145
  %v1416 = vpop.permute.xlu0 %1415
  %1419 = vset.pattern.permute.xlu0 0
  %1420 = vperm.xlu0 %1419, %v1146
  %v1421 = vpop.permute.xlu0 %1420
  %1424 = vset.pattern.permute.xlu0 0
  %1425 = vperm.xlu0 %1424, %v1147
  %v1426 = vpop.permute.xlu0 %1425
  %1429 = vset.pattern.permute.xlu0 0
  %1430 = vperm.xlu0 %1429, %v1148
  %v1431 = vpop.permute.xlu0 %1430
  %1434 = vset.pattern.permute.xlu0 0
  %1435 = vperm.xlu0 %1434, %v1149
  %v1436 = vpop.permute.xlu0 %1435
  %1439 = vset.pattern.permute.xlu0 0
  %1440 = vperm.xlu0 %1439, %v1150
  %v1441 = vpop.permute.xlu0 %1440
  %1444 = vset.pattern.permute.xlu0 0
  %1445 = vperm.xlu0 %1444, %v1151
  %v1446 = vpop.permute.xlu0 %1445
  %1449 = vset.pattern.permute.xlu0 0
  %1450 = vperm.xlu0 %1449, %v1152
  %v1451 = vpop.permute.xlu0 %1450
  %1454 = vset.pattern.permute.xlu0 0
  %1455 = vperm.xlu0 %1454, %v1153
  %v1456 = vpop.permute.xlu0 %1455
  %1459 = vset.pattern.permute.xlu0 0
  %1460 = vperm.xlu0 %1459, %v1154
  %v1461 = vpop.permute.xlu0 %1460
  %1464 = vset.pattern.permute.xlu0 0
  %1465 = vperm.xlu0 %1464, %v1155
  %v1466 = vpop.permute.xlu0 %1465
  %1469 = vset.pattern.permute.xlu0 0
  %1470 = vperm.xlu0 %1469, %v1156
  %v1471 = vpop.permute.xlu0 %1470
  %1474 = vset.pattern.permute.xlu0 0
  %1475 = vperm.xlu0 %1474, %v1157
  %v1476 = vpop.permute.xlu0 %1475
  %1479 = vset.pattern.permute.xlu0 0
  %1480 = vperm.xlu0 %1479, %v1158
  %v1481 = vpop.permute.xlu0 %1480
  %1484 = vset.pattern.permute.xlu0 0
  %1485 = vperm.xlu0 %1484, %v1159
  %v1486 = vpop.permute.xlu0 %1485
  %1489 = vset.pattern.permute.xlu0 0
  %1490 = vperm.xlu0 %1489, %v1160
  %v1491 = vpop.permute.xlu0 %1490
  %1494 = vset.pattern.permute.xlu0 0
  %1495 = vperm.xlu0 %1494, %v1161
  %v1496 = vpop.permute.xlu0 %1495
  %1499 = vset.pattern.permute.xlu0 0
  %1500 = vperm.xlu0 %1499, %v1162
  %v1501 = vpop.permute.xlu0 %1500
  %1504 = vset.pattern.permute.xlu0 0
  %1505 = vperm.xlu0 %1504, %v1163
  %v1506 = vpop.permute.xlu0 %1505
  %1509 = vset.pattern.permute.xlu0 0
  %1510 = vperm.xlu0 %1509, %v1164
  %v1511 = vpop.permute.xlu0 %1510
  %1514 = vset.pattern.permute.xlu0 0
  %1515 = vperm.xlu0 %1514, %v1165
  %v1516 = vpop.permute.xlu0 %1515
  %1519 = vset.pattern.permute.xlu0 0
  %1520 = vperm.xlu0 %1519, %v1166
  %v1521 = vpop.permute.xlu0 %1520
  %1524 = vset.pattern.permute.xlu0 0
  %1525 = vperm.xlu0 %1524, %v1167
  %v1526 = vpop.permute.xlu0 %1525
  %1529 = vset.pattern.permute.xlu0 0
  %1530 = vperm.xlu0 %1529, %v1168
  %v1531 = vpop.permute.xlu0 %1530
  %1534 = vset.pattern.permute.xlu0 0
  %1535 = vperm.xlu0 %1534, %v1169
  %v1536 = vpop.permute.xlu0 %1535
  %1539 = vset.pattern.permute.xlu0 0
  %1540 = vperm.xlu0 %1539, %v1170
  %v1541 = vpop.permute.xlu0 %1540
  %1544 = vset.pattern.permute.xlu0 0
  %1545 = vperm.xlu0 %1544, %v1171
  %v1546 = vpop.permute.xlu0 %1545
  %1549 = vset.pattern.permute.xlu0 0
  %1550 = vperm.xlu0 %1549, %v1172
  %v1551 = vpop.permute.xlu0 %1550
  %1554 = vset.pattern.permute.xlu0 0
  %1555 = vperm.xlu0 %1554, %v1173
  %v1556 = vpop.permute.xlu0 %1555
  %v1558 = vmul.f32 %v14, %v1321
  %v1559 = vmul.f32 %v15, %v1326
  %v1560 = vmul.f32 %v16, %v1331
  %v1561 = vmul.f32 %v17, %v1336
  %v1562 = vmul.f32 %v18, %v1341
  %v1563 = vmul.f32 %v19, %v1346
  %v1564 = vmul.f32 %v20, %v1351
  %v1565 = vmul.f32 %v21, %v1356
  %v1566 = vmul.f32 %v22, %v1361
  %v1567 = vmul.f32 %v23, %v1366
  %v1568 = vmul.f32 %v24, %v1371
  %v1569 = vmul.f32 %v25, %v1376
  %v1570 = vmul.f32 %v26, %v1381
  %v1571 = vmul.f32 %v27, %v1386
  %v1572 = vmul.f32 %v28, %v1391
  %v1573 = vmul.f32 %v29, %v1396
  %v1574 = vmul.f32 %v30, %v1401
  %v1575 = vmul.f32 %v31, %v1406
  %v1576 = vmul.f32 %v32, %v1411
  %v1577 = vmul.f32 %v33, %v1416
  %v1578 = vmul.f32 %v34, %v1421
  %v1579 = vmul.f32 %v35, %v1426
  %v1580 = vmul.f32 %v36, %v1431
  %v1581 = vmul.f32 %v37, %v1436
  %v1582 = vmul.f32 %v38, %v1441
  %v1583 = vmul.f32 %v39, %v1446
  %v1584 = vmul.f32 %v40, %v1451
  %v1585 = vmul.f32 %v41, %v1456
  %v1586 = vmul.f32 %v42, %v1461
  %v1587 = vmul.f32 %v43, %v1466
  %v1588 = vmul.f32 %v44, %v1471
  %v1589 = vmul.f32 %v45, %v1476
  %v1590 = vmul.f32 %v46, %v1481
  %v1591 = vmul.f32 %v47, %v1486
  %v1592 = vmul.f32 %v48, %v1491
  %v1593 = vmul.f32 %v49, %v1496
  %v1594 = vmul.f32 %v50, %v1501
  %v1595 = vmul.f32 %v51, %v1506
  %v1596 = vmul.f32 %v52, %v1511
  %v1597 = vmul.f32 %v53, %v1516
  %v1598 = vmul.f32 %v54, %v1521
  %v1599 = vmul.f32 %v55, %v1526
  %v1600 = vmul.f32 %v56, %v1531
  %v1601 = vmul.f32 %v57, %v1536
  %v1602 = vmul.f32 %v58, %v1541
  %v1603 = vmul.f32 %v59, %v1546
  %v1604 = vmul.f32 %v60, %v1551
  %v1605 = vmul.f32 %v61, %v1556
  %1607 = vset.pattern.permute.xlu0 0
  %1608 = vperm.xlu0 %1607, %v1270
  %v1609 = vpop.permute.xlu0 %1608
  %1612 = vset.pattern.permute.xlu0 0
  %1613 = vperm.xlu0 %1612, %v1271
  %v1614 = vpop.permute.xlu0 %1613
  %1617 = vset.pattern.permute.xlu0 0
  %1618 = vperm.xlu0 %1617, %v1272
  %v1619 = vpop.permute.xlu0 %1618
  %1622 = vset.pattern.permute.xlu0 0
  %1623 = vperm.xlu0 %1622, %v1273
  %v1624 = vpop.permute.xlu0 %1623
  %1627 = vset.pattern.permute.xlu0 0
  %1628 = vperm.xlu0 %1627, %v1274
  %v1629 = vpop.permute.xlu0 %1628
  %1632 = vset.pattern.permute.xlu0 0
  %1633 = vperm.xlu0 %1632, %v1275
  %v1634 = vpop.permute.xlu0 %1633
  %1637 = vset.pattern.permute.xlu0 0
  %1638 = vperm.xlu0 %1637, %v1276
  %v1639 = vpop.permute.xlu0 %1638
  %1642 = vset.pattern.permute.xlu0 0
  %1643 = vperm.xlu0 %1642, %v1277
  %v1644 = vpop.permute.xlu0 %1643
  %1647 = vset.pattern.permute.xlu0 0
  %1648 = vperm.xlu0 %1647, %v1278
  %v1649 = vpop.permute.xlu0 %1648
  %1652 = vset.pattern.permute.xlu0 0
  %1653 = vperm.xlu0 %1652, %v1279
  %v1654 = vpop.permute.xlu0 %1653
  %1657 = vset.pattern.permute.xlu0 0
  %1658 = vperm.xlu0 %1657, %v1280
  %v1659 = vpop.permute.xlu0 %1658
  %1662 = vset.pattern.permute.xlu0 0
  %1663 = vperm.xlu0 %1662, %v1281
  %v1664 = vpop.permute.xlu0 %1663
  %1667 = vset.pattern.permute.xlu0 0
  %1668 = vperm.xlu0 %1667, %v1282
  %v1669 = vpop.permute.xlu0 %1668
  %1672 = vset.pattern.permute.xlu0 0
  %1673 = vperm.xlu0 %1672, %v1283
  %v1674 = vpop.permute.xlu0 %1673
  %1677 = vset.pattern.permute.xlu0 0
  %1678 = vperm.xlu0 %1677, %v1284
  %v1679 = vpop.permute.xlu0 %1678
  %1682 = vset.pattern.permute.xlu0 0
  %1683 = vperm.xlu0 %1682, %v1285
  %v1684 = vpop.permute.xlu0 %1683
  %1687 = vset.pattern.permute.xlu0 0
  %1688 = vperm.xlu0 %1687, %v1286
  %v1689 = vpop.permute.xlu0 %1688
  %1692 = vset.pattern.permute.xlu0 0
  %1693 = vperm.xlu0 %1692, %v1287
  %v1694 = vpop.permute.xlu0 %1693
  %1697 = vset.pattern.permute.xlu0 0
  %1698 = vperm.xlu0 %1697, %v1288
  %v1699 = vpop.permute.xlu0 %1698
  %1702 = vset.pattern.permute.xlu0 0
  %1703 = vperm.xlu0 %1702, %v1289
  %v1704 = vpop.permute.xlu0 %1703
  %1707 = vset.pattern.permute.xlu0 0
  %1708 = vperm.xlu0 %1707, %v1290
  %v1709 = vpop.permute.xlu0 %1708
  %1712 = vset.pattern.permute.xlu0 0
  %1713 = vperm.xlu0 %1712, %v1291
  %v1714 = vpop.permute.xlu0 %1713
  %1717 = vset.pattern.permute.xlu0 0
  %1718 = vperm.xlu0 %1717, %v1292
  %v1719 = vpop.permute.xlu0 %1718
  %1722 = vset.pattern.permute.xlu0 0
  %1723 = vperm.xlu0 %1722, %v1293
  %v1724 = vpop.permute.xlu0 %1723
  %1727 = vset.pattern.permute.xlu0 0
  %1728 = vperm.xlu0 %1727, %v1294
  %v1729 = vpop.permute.xlu0 %1728
  %1732 = vset.pattern.permute.xlu0 0
  %1733 = vperm.xlu0 %1732, %v1295
  %v1734 = vpop.permute.xlu0 %1733
  %1737 = vset.pattern.permute.xlu0 0
  %1738 = vperm.xlu0 %1737, %v1296
  %v1739 = vpop.permute.xlu0 %1738
  %1742 = vset.pattern.permute.xlu0 0
  %1743 = vperm.xlu0 %1742, %v1297
  %v1744 = vpop.permute.xlu0 %1743
  %1747 = vset.pattern.permute.xlu0 0
  %1748 = vperm.xlu0 %1747, %v1298
  %v1749 = vpop.permute.xlu0 %1748
  %1752 = vset.pattern.permute.xlu0 0
  %1753 = vperm.xlu0 %1752, %v1299
  %v1754 = vpop.permute.xlu0 %1753
  %1757 = vset.pattern.permute.xlu0 0
  %1758 = vperm.xlu0 %1757, %v1300
  %v1759 = vpop.permute.xlu0 %1758
  %1762 = vset.pattern.permute.xlu0 0
  %1763 = vperm.xlu0 %1762, %v1301
  %v1764 = vpop.permute.xlu0 %1763
  %1767 = vset.pattern.permute.xlu0 0
  %1768 = vperm.xlu0 %1767, %v1302
  %v1769 = vpop.permute.xlu0 %1768
  %1772 = vset.pattern.permute.xlu0 0
  %1773 = vperm.xlu0 %1772, %v1303
  %v1774 = vpop.permute.xlu0 %1773
  %1777 = vset.pattern.permute.xlu0 0
  %1778 = vperm.xlu0 %1777, %v1304
  %v1779 = vpop.permute.xlu0 %1778
  %1782 = vset.pattern.permute.xlu0 0
  %1783 = vperm.xlu0 %1782, %v1305
  %v1784 = vpop.permute.xlu0 %1783
  %1787 = vset.pattern.permute.xlu0 0
  %1788 = vperm.xlu0 %1787, %v1306
  %v1789 = vpop.permute.xlu0 %1788
  %1792 = vset.pattern.permute.xlu0 0
  %1793 = vperm.xlu0 %1792, %v1307
  %v1794 = vpop.permute.xlu0 %1793
  %1797 = vset.pattern.permute.xlu0 0
  %1798 = vperm.xlu0 %1797, %v1308
  %v1799 = vpop.permute.xlu0 %1798
  %1802 = vset.pattern.permute.xlu0 0
  %1803 = vperm.xlu0 %1802, %v1309
  %v1804 = vpop.permute.xlu0 %1803
  %1807 = vset.pattern.permute.xlu0 0
  %1808 = vperm.xlu0 %1807, %v1310
  %v1809 = vpop.permute.xlu0 %1808
  %1812 = vset.pattern.permute.xlu0 0
  %1813 = vperm.xlu0 %1812, %v1311
  %v1814 = vpop.permute.xlu0 %1813
  %1817 = vset.pattern.permute.xlu0 0
  %1818 = vperm.xlu0 %1817, %v1312
  %v1819 = vpop.permute.xlu0 %1818
  %1822 = vset.pattern.permute.xlu0 0
  %1823 = vperm.xlu0 %1822, %v1313
  %v1824 = vpop.permute.xlu0 %1823
  %1827 = vset.pattern.permute.xlu0 0
  %1828 = vperm.xlu0 %1827, %v1314
  %v1829 = vpop.permute.xlu0 %1828
  %1832 = vset.pattern.permute.xlu0 0
  %1833 = vperm.xlu0 %1832, %v1315
  %v1834 = vpop.permute.xlu0 %1833
  %1837 = vset.pattern.permute.xlu0 0
  %1838 = vperm.xlu0 %1837, %v1316
  %v1839 = vpop.permute.xlu0 %1838
  %1842 = vset.pattern.permute.xlu0 0
  %1843 = vperm.xlu0 %1842, %v1317
  %v1844 = vpop.permute.xlu0 %1843
  %v1846 = vadd.f32 %v1558, %v1609
  %v1847 = vadd.f32 %v1559, %v1614
  %v1848 = vadd.f32 %v1560, %v1619
  %v1849 = vadd.f32 %v1561, %v1624
  %v1850 = vadd.f32 %v1562, %v1629
  %v1851 = vadd.f32 %v1563, %v1634
  %v1852 = vadd.f32 %v1564, %v1639
  %v1853 = vadd.f32 %v1565, %v1644
  %v1854 = vadd.f32 %v1566, %v1649
  %v1855 = vadd.f32 %v1567, %v1654
  %v1856 = vadd.f32 %v1568, %v1659
  %v1857 = vadd.f32 %v1569, %v1664
  %v1858 = vadd.f32 %v1570, %v1669
  %v1859 = vadd.f32 %v1571, %v1674
  %v1860 = vadd.f32 %v1572, %v1679
  %v1861 = vadd.f32 %v1573, %v1684
  %v1862 = vadd.f32 %v1574, %v1689
  %v1863 = vadd.f32 %v1575, %v1694
  %v1864 = vadd.f32 %v1576, %v1699
  %v1865 = vadd.f32 %v1577, %v1704
  %v1866 = vadd.f32 %v1578, %v1709
  %v1867 = vadd.f32 %v1579, %v1714
  %v1868 = vadd.f32 %v1580, %v1719
  %v1869 = vadd.f32 %v1581, %v1724
  %v1870 = vadd.f32 %v1582, %v1729
  %v1871 = vadd.f32 %v1583, %v1734
  %v1872 = vadd.f32 %v1584, %v1739
  %v1873 = vadd.f32 %v1585, %v1744
  %v1874 = vadd.f32 %v1586, %v1749
  %v1875 = vadd.f32 %v1587, %v1754
  %v1876 = vadd.f32 %v1588, %v1759
  %v1877 = vadd.f32 %v1589, %v1764
  %v1878 = vadd.f32 %v1590, %v1769
  %v1879 = vadd.f32 %v1591, %v1774
  %v1880 = vadd.f32 %v1592, %v1779
  %v1881 = vadd.f32 %v1593, %v1784
  %v1882 = vadd.f32 %v1594, %v1789
  %v1883 = vadd.f32 %v1595, %v1794
  %v1884 = vadd.f32 %v1596, %v1799
  %v1885 = vadd.f32 %v1597, %v1804
  %v1886 = vadd.f32 %v1598, %v1809
  %v1887 = vadd.f32 %v1599, %v1814
  %v1888 = vadd.f32 %v1600, %v1819
  %v1889 = vadd.f32 %v1601, %v1824
  %v1890 = vadd.f32 %v1602, %v1829
  %v1891 = vadd.f32 %v1603, %v1834
  %v1892 = vadd.f32 %v1604, %v1839
  %v1893 = vadd.f32 %v1605, %v1844
  %1894 = vst.msk [vmem:[%s3] sm:$0xff] %vm62, %v1846
  %1895 = vst.msk [vmem:[%s3 + $0x8] sm:$0xff] %vm62, %v1847
  %1896 = vst.msk [vmem:[%s3 + $0x10] sm:$0xff] %vm62, %v1848
  %1897 = vst.msk [vmem:[%s3 + $0x18] sm:$0xff] %vm62, %v1849
  %1898 = vst.msk [vmem:[%s3 + $0x20] sm:$0xff] %vm62, %v1850
  %1899 = vst.msk [vmem:[%s3 + $0x28] sm:$0xff] %vm62, %v1851
  %1900 = vst.msk [vmem:[%s3 + $0x30] sm:$0xff] %vm62, %v1852
  %1901 = vst.msk [vmem:[%s3 + $0x38] sm:$0xff] %vm62, %v1853
  %1902 = vst.msk [vmem:[%s3 + $0x40] sm:$0xff] %vm62, %v1854
  %1903 = vst.msk [vmem:[%s3 + $0x48] sm:$0xff] %vm62, %v1855
  %1904 = vst.msk [vmem:[%s3 + $0x50] sm:$0xff] %vm62, %v1856
  %1905 = vst.msk [vmem:[%s3 + $0x58] sm:$0xff] %vm62, %v1857
  %1906 = vst.msk [vmem:[%s3 + $0x60] sm:$0xff] %vm62, %v1858
  %1907 = vst.msk [vmem:[%s3 + $0x68] sm:$0xff] %vm62, %v1859
  %1908 = vst.msk [vmem:[%s3 + $0x70] sm:$0xff] %vm62, %v1860
  %1909 = vst.msk [vmem:[%s3 + $0x78] sm:$0xff] %vm62, %v1861
  %1910 = vst.msk [vmem:[%s3 + $0x80] sm:$0xff] %vm62, %v1862
  %1911 = vst.msk [vmem:[%s3 + $0x88] sm:$0xff] %vm62, %v1863
  %1912 = vst.msk [vmem:[%s3 + $0x90] sm:$0xff] %vm62, %v1864
  %1913 = vst.msk [vmem:[%s3 + $0x98] sm:$0xff] %vm62, %v1865
  %1914 = vst.msk [vmem:[%s3 + $0xa0] sm:$0xff] %vm62, %v1866
  %1915 = vst.msk [vmem:[%s3 + $0xa8] sm:$0xff] %vm62, %v1867
  %1916 = vst.msk [vmem:[%s3 + $0xb0] sm:$0xff] %vm62, %v1868
  %1917 = vst.msk [vmem:[%s3 + $0xb8] sm:$0xff] %vm62, %v1869
  %1918 = vst.msk [vmem:[%s3 + $0xc0] sm:$0xff] %vm62, %v1870
  %1919 = vst.msk [vmem:[%s3 + $0xc8] sm:$0xff] %vm62, %v1871
  %1920 = vst.msk [vmem:[%s3 + $0xd0] sm:$0xff] %vm62, %v1872
  %1921 = vst.msk [vmem:[%s3 + $0xd8] sm:$0xff] %vm62, %v1873
  %1922 = vst.msk [vmem:[%s3 + $0xe0] sm:$0xff] %vm62, %v1874
  %1923 = vst.msk [vmem:[%s3 + $0xe8] sm:$0xff] %vm62, %v1875
  %1924 = vst.msk [vmem:[%s3 + $0xf0] sm:$0xff] %vm62, %v1876
  %1925 = vst.msk [vmem:[%s3 + $0xf8] sm:$0xff] %vm62, %v1877
  %1926 = vst.msk [vmem:[%s3 + $0x100] sm:$0xff] %vm62, %v1878
  %1927 = vst.msk [vmem:[%s3 + $0x108] sm:$0xff] %vm62, %v1879
  %1928 = vst.msk [vmem:[%s3 + $0x110] sm:$0xff] %vm62, %v1880
  %1929 = vst.msk [vmem:[%s3 + $0x118] sm:$0xff] %vm62, %v1881
  %1930 = vst.msk [vmem:[%s3 + $0x120] sm:$0xff] %vm62, %v1882
  %1931 = vst.msk [vmem:[%s3 + $0x128] sm:$0xff] %vm62, %v1883
  %1932 = vst.msk [vmem:[%s3 + $0x130] sm:$0xff] %vm62, %v1884
  %1933 = vst.msk [vmem:[%s3 + $0x138] sm:$0xff] %vm62, %v1885
  %1934 = vst.msk [vmem:[%s3 + $0x140] sm:$0xff] %vm62, %v1886
  %1935 = vst.msk [vmem:[%s3 + $0x148] sm:$0xff] %vm62, %v1887
  %1936 = vst.msk [vmem:[%s3 + $0x150] sm:$0xff] %vm62, %v1888
  %1937 = vst.msk [vmem:[%s3 + $0x158] sm:$0xff] %vm62, %v1889
  %1938 = vst.msk [vmem:[%s3 + $0x160] sm:$0xff] %vm62, %v1890
  %1939 = vst.msk [vmem:[%s3 + $0x168] sm:$0xff] %vm62, %v1891
  %1940 = vst.msk [vmem:[%s3 + $0x170] sm:$0xff] %vm62, %v1892
  %1941 = vst.msk [vmem:[%s3 + $0x178] sm:$0xff] %vm62, %v1893
  // Predicated region
  $region14: #{tpu_custom_call.1} parent=0 // pred_check
    _
  $region15: #{tpu_custom_call.1} parent=0 // pred_check_branch
    %1943 = sbr.rel (0) target = $region17
  $region16: #{tpu_custom_call.1} parent=0 // pred_region
    _
  $region17: #{tpu_custom_call.1} parent=0 // pred_fallthru
    _
  // Predicated region
  $region18: #{tpu_custom_call.1} parent=0 // pred_check
    _
  $region19: #{tpu_custom_call.1} parent=0 // pred_check_branch
    %1945 = sbr.rel (0) target = $region21
  $region20: #{tpu_custom_call.1} parent=0 // pred_region
    _
  $region21: #{tpu_custom_call.1} parent=0 // pred_fallthru
    _

</llo_original>
